<compile_context>
chip_gen: v7x
topology: tpu7x:2x2x1
jax: 0.10.0
libtpu: 0.0.40
codegen_flags: <defaults>
</compile_context>

<pallas_src>
import functools

import jax
import jax.numpy as jnp
from jax.experimental import pallas as pl
from jax.experimental.pallas import tpu as pltpu


def _vmem_limit_bytes():
    """Per-generation scoped-VMEM limit with headroom for Mosaic scratch."""
    cap = 128 * 1024 * 1024
    try:
        cap = pltpu.get_tpu_info().vmem_capacity_bytes
    except Exception:
        pass
    # ~48 MiB on 64-MiB parts (v7x), 96 MiB on 128-MiB parts (v5e/v6e).
    return min((cap * 3) // 4, 96 * 1024 * 1024)


# --------------------------------------------------------------------------
# Kernel 1: fused q/k/v/gate projection (one wide bf16 MXU matmul per group).
# --------------------------------------------------------------------------
def _proj_kernel(x_ref, w_ref, bq_ref, q_ref, k_ref, v_ref, gate_ref,
                 *, heads_per_group, qkv_dim):
    G, D = heads_per_group, qkv_dim
    GD = G * D

    # One wide bf16 MXU matmul for [q | k | v | gate] of this head group.
    proj = jnp.dot(x_ref[...], w_ref[0], preferred_element_type=jnp.float32)

    q = proj[:, 0 * GD:1 * GD] + bq_ref[0]        # 1/sqrt(D) pre-folded into Wq/bq
    k = proj[:, 1 * GD:2 * GD]
    v = proj[:, 2 * GD:3 * GD]
    gate_ref[...] = jax.nn.sigmoid(proj[:, 3 * GD:4 * GD]).astype(gate_ref.dtype)

    # Re-lay q/k/v head-major (G, tile, D) for the flash kernel.  Doing the
    # 32-lane relayout here amortizes it once per sequence tile instead of
    # once per (q-tile, k-tile) step inside the attention loop.
    for h in range(G):
        sl = slice(h * D, (h + 1) * D)
        q_ref[h] = q[:, sl].astype(q_ref.dtype)
        k_ref[h] = k[:, sl].astype(k_ref.dtype)
        v_ref[h] = v[:, sl].astype(v_ref.dtype)


# --------------------------------------------------------------------------
# Kernel 2: flash attention over (group, q-tile, k-tile) with online softmax.
# --------------------------------------------------------------------------
def _flash_attn_kernel(q_ref, k_ref, v_ref, pair_ref, maskb_ref, gate_ref,
                       o_ref, m_sc, l_sc, acc_sc, *, heads_per_group):
    G = heads_per_group
    j = pl.program_id(2)

    @pl.when(j == 0)
    def _():
        m_sc[...] = jnp.full(m_sc.shape, -jnp.inf, dtype=m_sc.dtype)
        l_sc[...] = jnp.zeros(l_sc.shape, dtype=l_sc.dtype)
        acc_sc[...] = jnp.zeros(acc_sc.shape, dtype=acc_sc.dtype)

    # (G,tq,D) x (G,tk,D) -> (G,tq,tk); bf16 MXU inputs, f32 accumulation.
    s = jnp.einsum('gqd,gkd->gqk', q_ref[...], k_ref[...],
                   preferred_element_type=jnp.float32)
    # pair_logits upcast per-tile (DMA'd in its native bf16); the (1,tk) mask
    # bias row broadcasts with stride-0 over heads and q (no S^2 temporary).
    s = s + pair_ref[...].astype(jnp.float32) + maskb_ref[...]

    m_prev = m_sc[...]
    m_new = jnp.maximum(m_prev, jnp.max(s, axis=-1, keepdims=True))
    alpha = jnp.exp(m_prev - m_new)
    p = jnp.exp(s - m_new)                                   # unnormalized probs
    l_sc[...] = alpha * l_sc[...] + jnp.sum(p, axis=-1, keepdims=True)
    acc_sc[...] = alpha * acc_sc[...] + jnp.einsum(
        'gqk,gkd->gqd', p.astype(v_ref.dtype), v_ref[...],
        preferred_element_type=jnp.float32)
    m_sc[...] = m_new

    @pl.when(j == pl.num_programs(2) - 1)
    def _():
        # Normalize once after the PV accumulation (O(tq*D), not O(tq*tk)).
        out = acc_sc[...] * pl.reciprocal(l_sc[...], approx=True)   # (G,tq,D)
        # Head-major -> lane-dense (tq, G*D) once per q-tile, gate, and store.
        out2d = jnp.concatenate([out[h] for h in range(G)], axis=-1)
        o_ref[...] = (out2d * gate_ref[...]).astype(o_ref.dtype)


# --------------------------------------------------------------------------
# Host-side wrappers.
# --------------------------------------------------------------------------
def _pick_heads_per_group(num_head, qkv_dim):
    """Smallest G dividing num_head with G*qkv_dim a multiple of 128 lanes."""
    for g in range(1, num_head + 1):
        if num_head % g == 0 and (g * qkv_dim) % 128 == 0:
            return g
    return num_head


def prepare_attention_params(wq_t, bq, wk_t, wv_t, wg_t, num_head):
    """One-time weight repack (call at init, NOT per forward call).

    w*_t are pre-transposed [C, C] so that y = x @ w_t; bq is [C].  Builds the
    fused per-group bf16 weight slab [q | k | v | gate] plus the q bias, with
    the 1/sqrt(qkv_dim) query scale folded into Wq / bq.
    """
    C = wq_t.shape[0]
    D = C // num_head
    scale = D ** -0.5
    G = _pick_heads_per_group(num_head, D)
    num_groups = num_head // G
    GD = G * D

    def regroup(w_t):  # [C, C] -> [num_groups, C, G*D] (head-major columns)
        return jnp.transpose(w_t.reshape(C, num_groups, GD), (1, 0, 2))

    w_grp = jnp.concatenate(
        [regroup(wq_t * scale), regroup(wk_t), regroup(wv_t), regroup(wg_t)],
        axis=-1).astype(jnp.bfloat16)                          # [ng, C, 4*GD]
    bq_grp = (bq * scale).reshape(num_groups, 1, GD).astype(jnp.float32)
    return dict(w_grp=w_grp, bq_grp=bq_grp, num_head=num_head, qkv_dim=D,
                heads_per_group=G, num_groups=num_groups)


def attention_pallas(x, mask, pair_logits, params, *, tq=128, tk=128):
    """x: [S, C]; mask: [S] (1=keep, 0=mask); pair_logits: [H, S, S] (bf16 ok)."""
    S, C = x.shape
    H = params['num_head']
    D = params['qkv_dim']
    G = params['heads_per_group']
    ng = params['num_groups']
    GD = G * D

    tq = min(tq, S)
    tk = min(tk, S)
    assert S % tq == 0 and S % tk == 0, "sequence must divide the tile sizes"
    # TODO(synk): pad ragged sequence lengths to the tile size (the original
    # module pads to BLK_SZ=32 on first run) instead of asserting.

    vmem_limit = _vmem_limit_bytes()
    x_bf16 = x.astype(jnp.bfloat16)
    mask_bias = (1e9 * (mask.astype(jnp.float32) - 1.0)).reshape(1, S)

    # ---- 1) fused q/k/v/gate projection -----------------------------------
    proj_kernel = functools.partial(_proj_kernel, heads_per_group=G, qkv_dim=D)
    q_hsd, k_hsd, v_hsd, gate = pl.pallas_call(
        proj_kernel,
        out_shape=(
            jax.ShapeDtypeStruct((H, S, D), jnp.bfloat16),   # q (pre-scaled)
            jax.ShapeDtypeStruct((H, S, D), jnp.bfloat16),   # k
            jax.ShapeDtypeStruct((H, S, D), jnp.bfloat16),   # v
            jax.ShapeDtypeStruct((S, C), jnp.float32),       # sigmoid gate
        ),
        grid_spec=pltpu.PrefetchScalarGridSpec(
            num_scalar_prefetch=0,
            grid=(ng, S // tq),
            in_specs=[
                pl.BlockSpec((tq, C), lambda g, i: (i, 0)),            # x tile
                pl.BlockSpec((1, C, 4 * GD), lambda g, i: (g, 0, 0)),  # fused W
                pl.BlockSpec((1, 1, GD), lambda g, i: (g, 0, 0)),      # q bias
            ],
            out_specs=[
                pl.BlockSpec((G, tq, D), lambda g, i: (g, i, 0)),
                pl.BlockSpec((G, tq, D), lambda g, i: (g, i, 0)),
                pl.BlockSpec((G, tq, D), lambda g, i: (g, i, 0)),
                pl.BlockSpec((tq, GD), lambda g, i: (i, g)),           # lane-dense
            ],
        ),
        compiler_params=pltpu.CompilerParams(
            dimension_semantics=("parallel", "parallel"),
            vmem_limit_bytes=vmem_limit),
    )(x_bf16, params['w_grp'], params['bq_grp'])

    # ---- 2) flash attention (online softmax over k tiles) ------------------
    attn_kernel = functools.partial(_flash_attn_kernel, heads_per_group=G)
    out = pl.pallas_call(
        attn_kernel,
        out_shape=jax.ShapeDtypeStruct((S, C), jnp.float32),
        grid_spec=pltpu.PrefetchScalarGridSpec(
            num_scalar_prefetch=0,
            grid=(ng, S // tq, S // tk),
            in_specs=[
                pl.BlockSpec((G, tq, D), lambda g, i, j: (g, i, 0)),   # q
                pl.BlockSpec((G, tk, D), lambda g, i, j: (g, j, 0)),   # k
                pl.BlockSpec((G, tk, D), lambda g, i, j: (g, j, 0)),   # v
                pl.BlockSpec((G, tq, tk), lambda g, i, j: (g, i, j)),  # pair (native dtype)
                pl.BlockSpec((1, tk), lambda g, i, j: (0, j)),         # mask bias row
                pl.BlockSpec((tq, GD), lambda g, i, j: (i, g)),        # gate
            ],
            out_specs=pl.BlockSpec((tq, GD), lambda g, i, j: (i, g)),  # lane-dense
            scratch_shapes=[
                pltpu.VMEM((G, tq, 1), jnp.float32),    # running max
                pltpu.VMEM((G, tq, 1), jnp.float32),    # running denominator
                pltpu.VMEM((G, tq, D), jnp.float32),    # output accumulator
            ],
        ),
        compiler_params=pltpu.CompilerParams(
            dimension_semantics=("parallel", "parallel", "arbitrary"),
            vmem_limit_bytes=vmem_limit),
    )(q_hsd, k_hsd, v_hsd, pair_logits, mask_bias, gate)
    # TODO(synk): emit a bf16 output and/or pipeline_mode=pl.Buffered(3) on the
    # pair BlockSpec once the consumer dtype / per-gen VMEM budgets are pinned.
    return out


def attention_reference(x, mask, pair_logits, wq_t, bq, wk_t, wv_t, wg_t, num_head):
    S, C = x.shape
    D = C // num_head
    q = (x @ wq_t + bq).reshape(S, num_head, D).transpose(1, 0, 2) * (D ** -0.5)
    k = (x @ wk_t).reshape(S, num_head, D).transpose(1, 0, 2)
    v = (x @ wv_t).reshape(S, num_head, D).transpose(1, 0, 2)
    logits = jnp.einsum('hqc,hkc->hqk', q, k) + pair_logits
    logits = logits + (1e9 * (mask - 1.0))[None, None, :]
    w = jax.nn.softmax(logits, axis=-1)
    wa = jnp.einsum('hqk,hkc->hqc', w, v)
    wa = wa.transpose(1, 0, 2).reshape(S, C)
    return wa * jax.nn.sigmoid(x @ wg_t)


if __name__ == "__main__":
    # Small shapes consistent with the module: c_x divisible by num_head,
    # qkv_dim = 32 (= BLK_SZ); S chosen so the flash grid has >1 q-tile and
    # >1 k-tile (exercises the online softmax across k blocks).
    S, C, H = 256, 256, 8
    key = jax.random.PRNGKey(0)
    kx, kp, kq, kb, kk, kv, kg, km = jax.random.split(key, 8)

    x = jax.random.normal(kx, (S, C), dtype=jnp.float32)
    # pair_logits kept in bf16 (its natural activation dtype): the kernel DMAs
    # it as bf16 and upcasts per-tile.
    pair_logits = (0.1 * jax.random.normal(kp, (H, S, S), dtype=jnp.float32)
                   ).astype(jnp.bfloat16)
    mask = (jax.random.uniform(km, (S,)) > 0.2).astype(jnp.float32)

    wscale = 1.0 / (C ** 0.5)
    wq_t = wscale * jax.random.normal(kq, (C, C), dtype=jnp.float32)  # y = x @ W
    bq = 0.01 * jax.random.normal(kb, (C,), dtype=jnp.float32)
    wk_t = wscale * jax.random.normal(kk, (C, C), dtype=jnp.float32)
    wv_t = wscale * jax.random.normal(kv, (C, C), dtype=jnp.float32)
    wg_t = wscale * jax.random.normal(kg, (C, C), dtype=jnp.float32)

    # One-time weight repack, hoisted out of the forward pass.
    params = prepare_attention_params(wq_t, bq, wk_t, wv_t, wg_t, H)

    out = attention_pallas(x, mask, pair_logits, params)
    out = jax.block_until_ready(out)

    ref = attention_reference(x, mask, pair_logits.astype(jnp.float32),
                              wq_t, bq, wk_t, wv_t, wg_t, H)
    assert out.shape == (S, C)
    # Kernel matmuls use bf16 MXU inputs (f32 accumulation), bf16 pair bias and
    # an approximate EUP reciprocal; compare vs the pure-f32 reference with a
    # bf16-level tolerance.
    assert jnp.allclose(out, ref, atol=4e-2, rtol=4e-2), "mismatch vs reference"

    print("KERNEL_OK")
</pallas_src>

<mosaic_0001>
module attributes {stable_mosaic.version = 11 : i64} {
  func.func @_proj_kernel(%arg0: i32, %arg1: i32, %arg2: memref<128x256xbf16, #tpu.memory_space<vmem>>, %arg3: memref<1x256x512xbf16, #tpu.memory_space<vmem>>, %arg4: memref<1x1x128xf32, #tpu.memory_space<vmem>>, %arg5: memref<4x128x32xbf16, #tpu.memory_space<vmem>>, %arg6: memref<4x128x32xbf16, #tpu.memory_space<vmem>>, %arg7: memref<4x128x32xbf16, #tpu.memory_space<vmem>>, %arg8: memref<128x128xf32, #tpu.memory_space<vmem>>) attributes {dimension_semantics = [#tpu.dimension_semantics<parallel>, #tpu.dimension_semantics<parallel>], iteration_bounds = array<i64: 2, 2>, scalar_prefetch = 0 : i64, scratch_operands = 0 : i64, tpu.core_type = #tpu.core_type<tc>, window_params = [{transform_indices = @transform_0, window_bounds = array<i64: 128, 256>}, {transform_indices = @transform_1, window_bounds = array<i64: 1, 256, 512>}, {transform_indices = @transform_2, window_bounds = array<i64: 1, 1, 128>}, {transform_indices = @transform_3, window_bounds = array<i64: 4, 128, 32>}, {transform_indices = @transform_4, window_bounds = array<i64: 4, 128, 32>}, {transform_indices = @transform_5, window_bounds = array<i64: 4, 128, 32>}, {transform_indices = @transform_6, window_bounds = array<i64: 128, 128>}]} {
    %c0 = arith.constant 0 : index
    %c0_0 = arith.constant 0 : index
    %0 = vector.load %arg2[%c0, %c0_0] : memref<128x256xbf16, #tpu.memory_space<vmem>>, vector<128x256xbf16>
    %c0_1 = arith.constant 0 : index
    %c0_2 = arith.constant 0 : index
    %c0_3 = arith.constant 0 : index
    %1 = vector.load %arg3[%c0_1, %c0_2, %c0_3] : memref<1x256x512xbf16, #tpu.memory_space<vmem>>, vector<1x256x512xbf16>
    %2 = vector.shape_cast %1 : vector<1x256x512xbf16> to vector<256x512xbf16>
    %cst = arith.constant dense<0.000000e+00> : vector<128x512xf32>
    %3 = tpu.matmul %0, %2, %cst {dimension_numbers = #tpu.dot_dimension_numbers<[1], [0], [0], [1], [0, 0, 1, 1], [], []>} : vector<128x256xbf16>, vector<256x512xbf16>, vector<128x512xf32> -> vector<128x512xf32>
    %4 = vector.extract_strided_slice %3 {offsets = [0, 0], sizes = [128, 128], strides = [1, 1]} : vector<128x512xf32> to vector<128x128xf32>
    %c0_4 = arith.constant 0 : index
    %c0_5 = arith.constant 0 : index
    %c0_6 = arith.constant 0 : index
    %5 = vector.load %arg4[%c0_4, %c0_5, %c0_6] : memref<1x1x128xf32, #tpu.memory_space<vmem>>, vector<1x1x128xf32>
    %6 = vector.shape_cast %5 : vector<1x1x128xf32> to vector<1x128xf32>
    %7 = vector.broadcast %6 : vector<1x128xf32> to vector<128x128xf32>
    %8 = arith.addf %4, %7 : vector<128x128xf32>
    %9 = vector.extract_strided_slice %3 {offsets = [0, 128], sizes = [128, 128], strides = [1, 1]} : vector<128x512xf32> to vector<128x128xf32>
    %10 = vector.extract_strided_slice %3 {offsets = [0, 256], sizes = [128, 128], strides = [1, 1]} : vector<128x512xf32> to vector<128x128xf32>
    %11 = vector.extract_strided_slice %3 {offsets = [0, 384], sizes = [128, 128], strides = [1, 1]} : vector<128x512xf32> to vector<128x128xf32>
    %12 = arith.negf %11 : vector<128x128xf32>
    %13 = math.exp %12 : vector<128x128xf32>
    %cst_7 = arith.constant 1.000000e+00 : f32
    %14 = vector.broadcast %cst_7 : f32 to vector<128x128xf32>
    %15 = arith.addf %14, %13 : vector<128x128xf32>
    %16 = arith.divf %14, %15 : vector<128x128xf32>
    %c0_8 = arith.constant 0 : index
    %c0_9 = arith.constant 0 : index
    %17 = vector.load %arg8[%c0_8, %c0_9] : memref<128x128xf32, #tpu.memory_space<vmem>>, vector<128x128xf32>
    tpu.vector_store %arg8[%c0_8, %c0_9], %16 {strides = array<i32>} : memref<128x128xf32, #tpu.memory_space<vmem>>, vector<128x128xf32>,
    %18 = vector.extract_strided_slice %8 {offsets = [0, 0], sizes = [128, 32], strides = [1, 1]} : vector<128x128xf32> to vector<128x32xf32>
    %19 = arith.truncf %18 : vector<128x32xf32> to vector<128x32xbf16>
    %c0_10 = arith.constant 0 : index
    %c0_11 = arith.constant 0 : index
    %c0_12 = arith.constant 0 : index
    %20 = vector.load %arg5[%c0_10, %c0_11, %c0_12] : memref<4x128x32xbf16, #tpu.memory_space<vmem>>, vector<1x128x32xbf16>
    %21 = vector.shape_cast %20 : vector<1x128x32xbf16> to vector<128x32xbf16>
    %22 = vector.shape_cast %19 : vector<128x32xbf16> to vector<1x128x32xbf16>
    tpu.vector_store %arg5[%c0_10, %c0_11, %c0_12], %22 {strides = array<i32>} : memref<4x128x32xbf16, #tpu.memory_space<vmem>>, vector<1x128x32xbf16>,
    %23 = vector.extract_strided_slice %9 {offsets = [0, 0], sizes = [128, 32], strides = [1, 1]} : vector<128x128xf32> to vector<128x32xf32>
    %24 = arith.truncf %23 : vector<128x32xf32> to vector<128x32xbf16>
    %c0_13 = arith.constant 0 : index
    %c0_14 = arith.constant 0 : index
    %c0_15 = arith.constant 0 : index
    %25 = vector.load %arg6[%c0_13, %c0_14, %c0_15] : memref<4x128x32xbf16, #tpu.memory_space<vmem>>, vector<1x128x32xbf16>
    %26 = vector.shape_cast %25 : vector<1x128x32xbf16> to vector<128x32xbf16>
    %27 = vector.shape_cast %24 : vector<128x32xbf16> to vector<1x128x32xbf16>
    tpu.vector_store %arg6[%c0_13, %c0_14, %c0_15], %27 {strides = array<i32>} : memref<4x128x32xbf16, #tpu.memory_space<vmem>>, vector<1x128x32xbf16>,
    %28 = vector.extract_strided_slice %10 {offsets = [0, 0], sizes = [128, 32], strides = [1, 1]} : vector<128x128xf32> to vector<128x32xf32>
    %29 = arith.truncf %28 : vector<128x32xf32> to vector<128x32xbf16>
    %c0_16 = arith.constant 0 : index
    %c0_17 = arith.constant 0 : index
    %c0_18 = arith.constant 0 : index
    %30 = vector.load %arg7[%c0_16, %c0_17, %c0_18] : memref<4x128x32xbf16, #tpu.memory_space<vmem>>, vector<1x128x32xbf16>
    %31 = vector.shape_cast %30 : vector<1x128x32xbf16> to vector<128x32xbf16>
    %32 = vector.shape_cast %29 : vector<128x32xbf16> to vector<1x128x32xbf16>
    tpu.vector_store %arg7[%c0_16, %c0_17, %c0_18], %32 {strides = array<i32>} : memref<4x128x32xbf16, #tpu.memory_space<vmem>>, vector<1x128x32xbf16>,
    %33 = vector.extract_strided_slice %8 {offsets = [0, 32], sizes = [128, 32], strides = [1, 1]} : vector<128x128xf32> to vector<128x32xf32>
    %34 = arith.truncf %33 : vector<128x32xf32> to vector<128x32xbf16>
    %c1 = arith.constant 1 : index
    %c0_19 = arith.constant 0 : index
    %c0_20 = arith.constant 0 : index
    %35 = vector.load %arg5[%c1, %c0_19, %c0_20] : memref<4x128x32xbf16, #tpu.memory_space<vmem>>, vector<1x128x32xbf16>
    %36 = vector.shape_cast %35 : vector<1x128x32xbf16> to vector<128x32xbf16>
    %37 = vector.shape_cast %34 : vector<128x32xbf16> to vector<1x128x32xbf16>
    tpu.vector_store %arg5[%c1, %c0_19, %c0_20], %37 {strides = array<i32>} : memref<4x128x32xbf16, #tpu.memory_space<vmem>>, vector<1x128x32xbf16>,
    %38 = vector.extract_strided_slice %9 {offsets = [0, 32], sizes = [128, 32], strides = [1, 1]} : vector<128x128xf32> to vector<128x32xf32>
    %39 = arith.truncf %38 : vector<128x32xf32> to vector<128x32xbf16>
    %c1_21 = arith.constant 1 : index
    %c0_22 = arith.constant 0 : index
    %c0_23 = arith.constant 0 : index
    %40 = vector.load %arg6[%c1_21, %c0_22, %c0_23] : memref<4x128x32xbf16, #tpu.memory_space<vmem>>, vector<1x128x32xbf16>
    %41 = vector.shape_cast %40 : vector<1x128x32xbf16> to vector<128x32xbf16>
    %42 = vector.shape_cast %39 : vector<128x32xbf16> to vector<1x128x32xbf16>
    tpu.vector_store %arg6[%c1_21, %c0_22, %c0_23], %42 {strides = array<i32>} : memref<4x128x32xbf16, #tpu.memory_space<vmem>>, vector<1x128x32xbf16>,
    %43 = vector.extract_strided_slice %10 {offsets = [0, 32], sizes = [128, 32], strides = [1, 1]} : vector<128x128xf32> to vector<128x32xf32>
    %44 = arith.truncf %43 : vector<128x32xf32> to vector<128x32xbf16>
    %c1_24 = arith.constant 1 : index
    %c0_25 = arith.constant 0 : index
    %c0_26 = arith.constant 0 : index
    %45 = vector.load %arg7[%c1_24, %c0_25, %c0_26] : memref<4x128x32xbf16, #tpu.memory_space<vmem>>, vector<1x128x32xbf16>
    %46 = vector.shape_cast %45 : vector<1x128x32xbf16> to vector<128x32xbf16>
    %47 = vector.shape_cast %44 : vector<128x32xbf16> to vector<1x128x32xbf16>
    tpu.vector_store %arg7[%c1_24, %c0_25, %c0_26], %47 {strides = array<i32>} : memref<4x128x32xbf16, #tpu.memory_space<vmem>>, vector<1x128x32xbf16>,
    %48 = vector.extract_strided_slice %8 {offsets = [0, 64], sizes = [128, 32], strides = [1, 1]} : vector<128x128xf32> to vector<128x32xf32>
    %49 = arith.truncf %48 : vector<128x32xf32> to vector<128x32xbf16>
    %c2 = arith.constant 2 : index
    %c0_27 = arith.constant 0 : index
    %c0_28 = arith.constant 0 : index
    %50 = vector.load %arg5[%c2, %c0_27, %c0_28] : memref<4x128x32xbf16, #tpu.memory_space<vmem>>, vector<1x128x32xbf16>
    %51 = vector.shape_cast %50 : vector<1x128x32xbf16> to vector<128x32xbf16>
    %52 = vector.shape_cast %49 : vector<128x32xbf16> to vector<1x128x32xbf16>
    tpu.vector_store %arg5[%c2, %c0_27, %c0_28], %52 {strides = array<i32>} : memref<4x128x32xbf16, #tpu.memory_space<vmem>>, vector<1x128x32xbf16>,
    %53 = vector.extract_strided_slice %9 {offsets = [0, 64], sizes = [128, 32], strides = [1, 1]} : vector<128x128xf32> to vector<128x32xf32>
    %54 = arith.truncf %53 : vector<128x32xf32> to vector<128x32xbf16>
    %c2_29 = arith.constant 2 : index
    %c0_30 = arith.constant 0 : index
    %c0_31 = arith.constant 0 : index
    %55 = vector.load %arg6[%c2_29, %c0_30, %c0_31] : memref<4x128x32xbf16, #tpu.memory_space<vmem>>, vector<1x128x32xbf16>
    %56 = vector.shape_cast %55 : vector<1x128x32xbf16> to vector<128x32xbf16>
    %57 = vector.shape_cast %54 : vector<128x32xbf16> to vector<1x128x32xbf16>
    tpu.vector_store %arg6[%c2_29, %c0_30, %c0_31], %57 {strides = array<i32>} : memref<4x128x32xbf16, #tpu.memory_space<vmem>>, vector<1x128x32xbf16>,
    %58 = vector.extract_strided_slice %10 {offsets = [0, 64], sizes = [128, 32], strides = [1, 1]} : vector<128x128xf32> to vector<128x32xf32>
    %59 = arith.truncf %58 : vector<128x32xf32> to vector<128x32xbf16>
    %c2_32 = arith.constant 2 : index
    %c0_33 = arith.constant 0 : index
    %c0_34 = arith.constant 0 : index
    %60 = vector.load %arg7[%c2_32, %c0_33, %c0_34] : memref<4x128x32xbf16, #tpu.memory_space<vmem>>, vector<1x128x32xbf16>
    %61 = vector.shape_cast %60 : vector<1x128x32xbf16> to vector<128x32xbf16>
    %62 = vector.shape_cast %59 : vector<128x32xbf16> to vector<1x128x32xbf16>
    tpu.vector_store %arg7[%c2_32, %c0_33, %c0_34], %62 {strides = array<i32>} : memref<4x128x32xbf16, #tpu.memory_space<vmem>>, vector<1x128x32xbf16>,
    %63 = vector.extract_strided_slice %8 {offsets = [0, 96], sizes = [128, 32], strides = [1, 1]} : vector<128x128xf32> to vector<128x32xf32>
    %64 = arith.truncf %63 : vector<128x32xf32> to vector<128x32xbf16>
    %c3 = arith.constant 3 : index
    %c0_35 = arith.constant 0 : index
    %c0_36 = arith.constant 0 : index
    %65 = vector.load %arg5[%c3, %c0_35, %c0_36] : memref<4x128x32xbf16, #tpu.memory_space<vmem>>, vector<1x128x32xbf16>
    %66 = vector.shape_cast %65 : vector<1x128x32xbf16> to vector<128x32xbf16>
    %67 = vector.shape_cast %64 : vector<128x32xbf16> to vector<1x128x32xbf16>
    tpu.vector_store %arg5[%c3, %c0_35, %c0_36], %67 {strides = array<i32>} : memref<4x128x32xbf16, #tpu.memory_space<vmem>>, vector<1x128x32xbf16>,
    %68 = vector.extract_strided_slice %9 {offsets = [0, 96], sizes = [128, 32], strides = [1, 1]} : vector<128x128xf32> to vector<128x32xf32>
    %69 = arith.truncf %68 : vector<128x32xf32> to vector<128x32xbf16>
    %c3_37 = arith.constant 3 : index
    %c0_38 = arith.constant 0 : index
    %c0_39 = arith.constant 0 : index
    %70 = vector.load %arg6[%c3_37, %c0_38, %c0_39] : memref<4x128x32xbf16, #tpu.memory_space<vmem>>, vector<1x128x32xbf16>
    %71 = vector.shape_cast %70 : vector<1x128x32xbf16> to vector<128x32xbf16>
    %72 = vector.shape_cast %69 : vector<128x32xbf16> to vector<1x128x32xbf16>
    tpu.vector_store %arg6[%c3_37, %c0_38, %c0_39], %72 {strides = array<i32>} : memref<4x128x32xbf16, #tpu.memory_space<vmem>>, vector<1x128x32xbf16>,
    %73 = vector.extract_strided_slice %10 {offsets = [0, 96], sizes = [128, 32], strides = [1, 1]} : vector<128x128xf32> to vector<128x32xf32>
    %74 = arith.truncf %73 : vector<128x32xf32> to vector<128x32xbf16>
    %c3_40 = arith.constant 3 : index
    %c0_41 = arith.constant 0 : index
    %c0_42 = arith.constant 0 : index
    %75 = vector.load %arg7[%c3_40, %c0_41, %c0_42] : memref<4x128x32xbf16, #tpu.memory_space<vmem>>, vector<1x128x32xbf16>
    %76 = vector.shape_cast %75 : vector<1x128x32xbf16> to vector<128x32xbf16>
    %77 = vector.shape_cast %74 : vector<128x32xbf16> to vector<1x128x32xbf16>
    tpu.vector_store %arg7[%c3_40, %c0_41, %c0_42], %77 {strides = array<i32>} : memref<4x128x32xbf16, #tpu.memory_space<vmem>>, vector<1x128x32xbf16>,
    return
  }
  func.func @transform_0(%arg0: i32, %arg1: i32) -> (i32, i32) {
    %c0_i32 = arith.constant 0 : i32
    %c0_i32_0 = arith.constant 0 : i32
    return %arg1, %c0_i32 : i32, i32
  }
  func.func @transform_1(%arg0: i32, %arg1: i32) -> (i32, i32, i32) {
    %c0_i32 = arith.constant 0 : i32
    %c0_i32_0 = arith.constant 0 : i32
    %c0_i32_1 = arith.constant 0 : i32
    return %arg0, %c0_i32, %c0_i32_0 : i32, i32, i32
  }
  func.func @transform_2(%arg0: i32, %arg1: i32) -> (i32, i32, i32) {
    %c0_i32 = arith.constant 0 : i32
    %c0_i32_0 = arith.constant 0 : i32
    %c0_i32_1 = arith.constant 0 : i32
    return %arg0, %c0_i32, %c0_i32_0 : i32, i32, i32
  }
  func.func @transform_3(%arg0: i32, %arg1: i32) -> (i32, i32, i32) {
    %c0_i32 = arith.constant 0 : i32
    %c0_i32_0 = arith.constant 0 : i32
    return %arg0, %arg1, %c0_i32 : i32, i32, i32
  }
  func.func @transform_4(%arg0: i32, %arg1: i32) -> (i32, i32, i32) {
    %c0_i32 = arith.constant 0 : i32
    %c0_i32_0 = arith.constant 0 : i32
    return %arg0, %arg1, %c0_i32 : i32, i32, i32
  }
  func.func @transform_5(%arg0: i32, %arg1: i32) -> (i32, i32, i32) {
    %c0_i32 = arith.constant 0 : i32
    %c0_i32_0 = arith.constant 0 : i32
    return %arg0, %arg1, %c0_i32 : i32, i32, i32
  }
  func.func @transform_6(%arg0: i32, %arg1: i32) -> (i32, i32) {
    %c0_i32 = arith.constant 0 : i32
    return %arg1, %arg0 : i32, i32
  }
}

</mosaic_0001>

<llo_original>
// kernel: tpu_custom_call.1
$region0: #{tpu_custom_call.1}
  #allocation0 [shape = 'u32[]', space=smem, size = 0x4, offset = 0x4, fixed_abs, tag = 'smem constant byte address 0x4 - core index']
  #allocation1 [shape = 'u32[144,128]{1,0:T(1,128)}', space=vmem, size = 0x12000, scoped, tag = 'internal scratch']
  #allocation14 [shape = 's32[]', space=sflag, size = 0x4, offset = 0, fixed_abs, tag = 'sflag constant byte address 0x0 - dummy sync flag']
  #allocation16 [shape = 's32[]', space=sflag, size = 0x4, offset = 0, fixed_abs, tag = 'sflag constant byte address 0x0 - dummy sync flag']
  #allocation18 [shape = 's32[]', space=sflag, size = 0x4, offset = 0, fixed_abs, tag = 'sflag constant byte address 0x0 - dummy sync flag']
  %s0 = inlined_call_operand.hbm [shape: bf16[256,256], index: 0, kind: input, shape index: {}]
  %s1 = inlined_call_operand.hbm [shape: bf16[2,256,512], index: 1, kind: input, shape index: {}]
  %s2 = inlined_call_operand.hbm [shape: f32[2,1,128], index: 2, kind: input, shape index: {}]
  %s3 = inlined_call_operand.hbm [shape: bf16[8,256,32], index: 3, kind: output, shape index: {0}]
  %s4 = inlined_call_operand.hbm [shape: bf16[8,256,32], index: 4, kind: output, shape index: {1}]
  %s5 = inlined_call_operand.hbm [shape: bf16[8,256,32], index: 5, kind: output, shape index: {2}]
  %s6 = inlined_call_operand.hbm [shape: f32[256,256], index: 6, kind: output, shape index: {3}]
  %7 = xla_tuple %s3, %s4, %s5, %s6
  %s8 = sld [smem:[#allocation0]]
  $region81: #{tpu_custom_call.1} parent=0
    _
  %s10 = ssub.s32 1, %s8
  %s11 = scalar_select 0, %s10, %s8
  $region1: #{tpu_custom_call.1} parent=0
    #allocation2 [shape = 'u8[131072]{0}', space=vmem, size = 0x20000, scoped, tag = 'input window, operand 0']
    #allocation3 [shape = 's32[2]{0}', space=sflag, size = 0x8, scoped, tag = 'scoped memory for tpu_custom_call.1']
    #allocation4 [shape = 's32[2]{0}', space=sflag, size = 0x8, scoped, tag = 'scoped memory for tpu_custom_call.1']
    #allocation5 [shape = 'u8[524288]{0}', space=vmem, size = 0x80000, scoped, tag = 'input window, operand 1']
    #allocation6 [shape = 's32[2]{0}', space=sflag, size = 0x8, scoped, tag = 'scoped memory for tpu_custom_call.1']
    #allocation7 [shape = 'u8[1024]{0}', space=vmem, size = 0x400, scoped, tag = 'input window, operand 2']
    #allocation8 [shape = 'u8[262144]{0}', space=vmem, size = 0x40000, scoped, tag = 'output window, operand 0']
    #allocation9 [shape = 'u8[262144]{0}', space=vmem, size = 0x40000, scoped, tag = 'output window, operand 1']
    #allocation10 [shape = 's32[2]{0}', space=sflag, size = 0x8, scoped, tag = 'scoped memory for tpu_custom_call.1']
    #allocation11 [shape = 'u8[262144]{0}', space=vmem, size = 0x40000, scoped, tag = 'output window, operand 2']
    #allocation12 [shape = 'u8[131072]{0}', space=vmem, size = 0x20000, scoped, tag = 'output window, operand 3']
    #allocation13 [shape = 's32[2]{0}', space=sflag, size = 0x8, scoped, tag = 'scoped memory for tpu_custom_call.1']
    %12 = vsyncpa [#allocation3], 0
    %s13 = scalar_lea.sflag [#allocation3], 1
    %14 = vsyncpa %s13, 0
    %15 = vsyncpa [#allocation6], 0
    %s16 = scalar_lea.sflag [#allocation6], 1
    %17 = vsyncpa %s16, 0
    %18 = vsyncpa [#allocation4], 0
    %s19 = scalar_lea.sflag [#allocation4], 1
    %20 = vsyncpa %s19, 0
    %21 = vsyncpa [#allocation10], 0
    %s22 = scalar_lea.sflag [#allocation10], 1
    %23 = vsyncpa %s22, 0
    %24 = vsyncpa [#allocation13], 0
    %s25 = scalar_lea.sflag [#allocation13], 1
    %26 = vsyncpa %s25, 0
    loop: start=0, step=1, limit=6
    $region2: #{tpu_custom_call.1} parent=1 // loop_pre_header
      _
    $region3: #{tpu_custom_call.1} parent=1 // loop_header
      %s28 = sphi 0, %s32
      %p29 = scmp.ge.s32.totalorder %s28, 6
      %s35 = sphi 0, %s47
      %s36 = sphi 0, %s43
      %s37 = sphi 0, %s35
      %s38 = sphi 0, %s36
      %s39 = sphi 0, %s37
      %s40 = sphi 0, %s38
      %s50 = sphi 0, %s52
      %s53 = sphi 0, %s50
      %s54 = sphi 0, %s53
      %s70 = sphi 0, %s54
      %s76 = sphi 0, %s78
      %s79 = sphi 0, %s76
      %s80 = sphi 0, %s79
      %s96 = sphi 0, %s80
      %s102 = sphi 0, %s104
      %s105 = sphi 0, %s102
      %s106 = sphi 0, %s105
      %s122 = sphi 0, %s106
      %s130 = sphi 0, %s132
      %s133 = sphi 0, %s130
      %s134 = sphi 0, %s133
      %s150 = sphi 0, %s134
      %s158 = sphi 0, %s160
      %s161 = sphi 0, %s158
      %s162 = sphi 0, %s161
      %s178 = sphi 0, %s162
      %s186 = sphi 0, %s188
      %s189 = sphi 0, %s186
      %s190 = sphi 0, %s189
      %s206 = sphi 0, %s190
      %s214 = sphi 0, %s216
      %s217 = sphi 0, %s214
      %s218 = sphi 0, %s217
      %s234 = sphi 0, %s218
    $region4: #{tpu_custom_call.1} parent=1 // loop_header_branch
      %31 = sbr.rel (%p29) target = $region8
    $region5: #{tpu_custom_call.1} parent=1 // loop_body
      %s33 = ssub.s32 %s28, 1
      %s34 = ssub.s32 %s28, 2
      %s41 = sadd.s32 1, %s36
      %p42 = scmp.ge.s32.totalorder %s41, 2
      %s43 = scalar_select %p42, 0, %s41
      %s44 = sadd.s32 1, %s35
      %s45 = scalar_select %p42, %s44, %s35
      %p46 = scmp.ge.s32.totalorder %s45, 2
      %s47 = scalar_select %p46, 0, %s45
      %s48 = ssub.s32 %s36, %s43
      %p49 = scmp.eq.s32.totalorder %s48, 0
      %s51 = sadd.s32 %s50, 1
      %s52 = scalar_select %p49, %s50, %s51
      %p55 = pneg %p49
      %p56 = scmp.eq.s32.totalorder %s28, 3
      %p57 = por %p55, %p56
      %p58 = scmp.ne.s32.totalorder %s50, %s53
      %p59 = scmp.eq.s32.totalorder %s28, 0
      %p60 = por %p58, %p59
      %p61 = scmp.ne.s32.totalorder %s50, %s53
      %p62 = scmp.eq.s32.totalorder %s33, 3
      %p63 = por %p61, %p62
      %p64 = scmp.ne.s32.totalorder %s53, %s54
      %p65 = scmp.eq.s32.totalorder %s33, 0
      %p66 = por %p64, %p65
      %p67 = scmp.ne.s32.totalorder %s53, %s54
      %p68 = scmp.eq.s32.totalorder %s34, 3
      %p69 = por %p67, %p68
      %p71 = scmp.ne.s32.totalorder %s54, %s70
      %p72 = scmp.eq.s32.totalorder %s34, 0
      %p73 = por %p71, %p72
      %s74 = ssub.s32 %s35, %s47
      %p75 = scmp.eq.s32.totalorder %s74, 0
      %s77 = sadd.s32 %s76, 1
      %s78 = scalar_select %p75, %s76, %s77
      %p81 = pneg %p75
      %p82 = scmp.eq.s32.totalorder %s28, 3
      %p83 = por %p81, %p82
      %p84 = scmp.ne.s32.totalorder %s76, %s79
      %p85 = scmp.eq.s32.totalorder %s28, 0
      %p86 = por %p84, %p85
      %p87 = scmp.ne.s32.totalorder %s76, %s79
      %p88 = scmp.eq.s32.totalorder %s33, 3
      %p89 = por %p87, %p88
      %p90 = scmp.ne.s32.totalorder %s79, %s80
      %p91 = scmp.eq.s32.totalorder %s33, 0
      %p92 = por %p90, %p91
      %p93 = scmp.ne.s32.totalorder %s79, %s80
      %p94 = scmp.eq.s32.totalorder %s34, 3
      %p95 = por %p93, %p94
      %p97 = scmp.ne.s32.totalorder %s80, %s96
      %p98 = scmp.eq.s32.totalorder %s34, 0
      %p99 = por %p97, %p98
      %s100 = ssub.s32 %s35, %s47
      %p101 = scmp.eq.s32.totalorder %s100, 0
      %s103 = sadd.s32 %s102, 1
      %s104 = scalar_select %p101, %s102, %s103
      %p107 = pneg %p101
      %p108 = scmp.eq.s32.totalorder %s28, 3
      %p109 = por %p107, %p108
      %p110 = scmp.ne.s32.totalorder %s102, %s105
      %p111 = scmp.eq.s32.totalorder %s28, 0
      %p112 = por %p110, %p111
      %p113 = scmp.ne.s32.totalorder %s102, %s105
      %p114 = scmp.eq.s32.totalorder %s33, 3
      %p115 = por %p113, %p114
      %p116 = scmp.ne.s32.totalorder %s105, %s106
      %p117 = scmp.eq.s32.totalorder %s33, 0
      %p118 = por %p116, %p117
      %p119 = scmp.ne.s32.totalorder %s105, %s106
      %p120 = scmp.eq.s32.totalorder %s34, 3
      %p121 = por %p119, %p120
      %p123 = scmp.ne.s32.totalorder %s106, %s122
      %p124 = scmp.eq.s32.totalorder %s34, 0
      %p125 = por %p123, %p124
      %s126 = ssub.s32 %s35, %s47
      %s127 = ssub.s32 %s36, %s43
      %s128 = sor.u32 %s126, %s127
      %p129 = scmp.eq.s32.totalorder %s128, 0
      %s131 = sadd.s32 %s130, 1
      %s132 = scalar_select %p129, %s130, %s131
      %p135 = pneg %p129
      %p136 = scmp.eq.s32.totalorder %s28, 3
      %p137 = por %p135, %p136
      %p138 = scmp.ne.s32.totalorder %s130, %s133
      %p139 = scmp.eq.s32.totalorder %s28, 0
      %p140 = por %p138, %p139
      %p141 = scmp.ne.s32.totalorder %s130, %s133
      %p142 = scmp.eq.s32.totalorder %s33, 3
      %p143 = por %p141, %p142
      %p144 = scmp.ne.s32.totalorder %s133, %s134
      %p145 = scmp.eq.s32.totalorder %s33, 0
      %p146 = por %p144, %p145
      %p147 = scmp.ne.s32.totalorder %s133, %s134
      %p148 = scmp.eq.s32.totalorder %s34, 3
      %p149 = por %p147, %p148
      %p151 = scmp.ne.s32.totalorder %s134, %s150
      %p152 = scmp.eq.s32.totalorder %s34, 0
      %p153 = por %p151, %p152
      %s154 = ssub.s32 %s35, %s47
      %s155 = ssub.s32 %s36, %s43
      %s156 = sor.u32 %s154, %s155
      %p157 = scmp.eq.s32.totalorder %s156, 0
      %s159 = sadd.s32 %s158, 1
      %s160 = scalar_select %p157, %s158, %s159
      %p163 = pneg %p157
      %p164 = scmp.eq.s32.totalorder %s28, 3
      %p165 = por %p163, %p164
      %p166 = scmp.ne.s32.totalorder %s158, %s161
      %p167 = scmp.eq.s32.totalorder %s28, 0
      %p168 = por %p166, %p167
      %p169 = scmp.ne.s32.totalorder %s158, %s161
      %p170 = scmp.eq.s32.totalorder %s33, 3
      %p171 = por %p169, %p170
      %p172 = scmp.ne.s32.totalorder %s161, %s162
      %p173 = scmp.eq.s32.totalorder %s33, 0
      %p174 = por %p172, %p173
      %p175 = scmp.ne.s32.totalorder %s161, %s162
      %p176 = scmp.eq.s32.totalorder %s34, 3
      %p177 = por %p175, %p176
      %p179 = scmp.ne.s32.totalorder %s162, %s178
      %p180 = scmp.eq.s32.totalorder %s34, 0
      %p181 = por %p179, %p180
      %s182 = ssub.s32 %s35, %s47
      %s183 = ssub.s32 %s36, %s43
      %s184 = sor.u32 %s182, %s183
      %p185 = scmp.eq.s32.totalorder %s184, 0
      %s187 = sadd.s32 %s186, 1
      %s188 = scalar_select %p185, %s186, %s187
      %p191 = pneg %p185
      %p192 = scmp.eq.s32.totalorder %s28, 3
      %p193 = por %p191, %p192
      %p194 = scmp.ne.s32.totalorder %s186, %s189
      %p195 = scmp.eq.s32.totalorder %s28, 0
      %p196 = por %p194, %p195
      %p197 = scmp.ne.s32.totalorder %s186, %s189
      %p198 = scmp.eq.s32.totalorder %s33, 3
      %p199 = por %p197, %p198
      %p200 = scmp.ne.s32.totalorder %s189, %s190
      %p201 = scmp.eq.s32.totalorder %s33, 0
      %p202 = por %p200, %p201
      %p203 = scmp.ne.s32.totalorder %s189, %s190
      %p204 = scmp.eq.s32.totalorder %s34, 3
      %p205 = por %p203, %p204
      %p207 = scmp.ne.s32.totalorder %s190, %s206
      %p208 = scmp.eq.s32.totalorder %s34, 0
      %p209 = por %p207, %p208
      %s210 = ssub.s32 %s36, %s43
      %s211 = ssub.s32 %s35, %s47
      %s212 = sor.u32 %s210, %s211
      %p213 = scmp.eq.s32.totalorder %s212, 0
      %s215 = sadd.s32 %s214, 1
      %s216 = scalar_select %p213, %s214, %s215
      %p219 = pneg %p213
      %p220 = scmp.eq.s32.totalorder %s28, 3
      %p221 = por %p219, %p220
      %p222 = scmp.ne.s32.totalorder %s214, %s217
      %p223 = scmp.eq.s32.totalorder %s28, 0
      %p224 = por %p222, %p223
      %p225 = scmp.ne.s32.totalorder %s214, %s217
      %p226 = scmp.eq.s32.totalorder %s33, 3
      %p227 = por %p225, %p226
      %p228 = scmp.ne.s32.totalorder %s217, %s218
      %p229 = scmp.eq.s32.totalorder %s33, 0
      %p230 = por %p228, %p229
      %p231 = scmp.ne.s32.totalorder %s217, %s218
      %p232 = scmp.eq.s32.totalorder %s34, 3
      %p233 = por %p231, %p232
      %p235 = scmp.ne.s32.totalorder %s218, %s234
      %p236 = scmp.eq.s32.totalorder %s34, 0
      %p237 = por %p235, %p236
      %p238 = scmp.le.s32.totalorder 1, %s28
      %p239 = scmp.lt.s32.totalorder %s28, 5
      %p240 = pnand %p238, %p239
      %p241 = pneg %p240
      // Predicated region
      $region9: #{tpu_custom_call.1} parent=5 // pred_check
        _
      $region10: #{tpu_custom_call.1} parent=5 // pred_check_branch
        %243 = sbr.rel (%p240) target = $region12
      $region11: #{tpu_custom_call.1} parent=5 // pred_region
        %s244 = ssub.s32 %s28, 1
      $region12: #{tpu_custom_call.1} parent=5 // pred_fallthru
        _
      %p245 = scmp.lt.s32.totalorder %s28, 4
      // Predicated region
      $region13: #{tpu_custom_call.1} parent=5 // pred_check
        %p246 = pneg %p245
      $region14: #{tpu_custom_call.1} parent=5 // pred_check_branch
        %248 = sbr.rel (%p246) target = $region16
      $region15: #{tpu_custom_call.1} parent=5 // pred_region
        // Predicated region
        $region17: #{tpu_custom_call.1} parent=15 // pred_check
          %p249 = pneg %p60
        $region18: #{tpu_custom_call.1} parent=15 // pred_check_branch
          %251 = sbr.rel (%p249) target = $region20
        $region19: #{tpu_custom_call.1} parent=15 // pred_region
          %s252 = sand.u32 %s50, 1
          %s253 = scalar_lea.sflag [#allocation3], %s252
          %s254 = sand.u32 %s50, 1
          %s255 = smul.addr %s254, 128
          %s256 = scalar_lea.vmem [#allocation2], %s255
          %s257 = smul.u32 16, %s36
          %s259 = ssub.s32 2048, 2048
          %260 = vsyncadd %s253, %s259
          %s261 = smul.addr %s257, 2
          %s262 = smul.addr %s261, 64
          %s263 = scalar_lea.hbm %s0, %s262
          %s264 = sshll.u32 %s256, 4
          %s265 = int_to_ptr.vmem [resolvable:$true] %s264
          %270 = dma.hbm_to_vmem [thread:$0]  %s263, 2048, %s265, %s253, 128, 128, 8
        $region20: #{tpu_custom_call.1} parent=15 // pred_fallthru
          _
        // Predicated region
        $region21: #{tpu_custom_call.1} parent=15 // pred_check
          %p271 = pneg %p86
        $region22: #{tpu_custom_call.1} parent=15 // pred_check_branch
          %273 = sbr.rel (%p271) target = $region24
        $region23: #{tpu_custom_call.1} parent=15 // pred_region
          %s274 = sand.u32 %s28, 1
          %s275 = scalar_lea.sflag [#allocation6], %s274
          %s276 = sand.u32 %s76, 1
          %s277 = smul.addr %s276, 512
          %s278 = scalar_lea.vmem [#allocation5], %s277
          %s280 = ssub.s32 8192, 8192
          %281 = vsyncadd %s275, %s280
          %s282 = smul.addr %s35, 128
          %s283 = smul.addr %s282, 64
          %s284 = scalar_lea.hbm %s1, %s283
          %s285 = sshll.u32 %s278, 4
          %s286 = int_to_ptr.vmem [resolvable:$true] %s285
          %291 = dma.hbm_to_vmem [thread:$0]  %s284, 8192, %s286, %s275, 256, 256, 16
        $region24: #{tpu_custom_call.1} parent=15 // pred_fallthru
          _
        // Predicated region
        $region25: #{tpu_custom_call.1} parent=15 // pred_check
          %p292 = pneg %p112
        $region26: #{tpu_custom_call.1} parent=15 // pred_check_branch
          %294 = sbr.rel (%p292) target = $region28
        $region27: #{tpu_custom_call.1} parent=15 // pred_region
          %s295 = sand.u32 %s28, 1
          %s296 = scalar_lea.sflag [#allocation6], %s295
          %s297 = sand.u32 %s102, 1
          %s298 = scalar_lea.vmem [#allocation7], %s297
          %s300 = ssub.s32 16, 16
          %301 = vsyncadd %s296, %s300
          %s302 = smul.addr %s35, 16
          %s303 = scalar_lea.hbm %s2, %s302
          %s305 = sshll.u32 %s298, 4
          %s306 = int_to_ptr.vmem [resolvable:$true] %s305
          %308 = dma.hbm_to_vmem [thread:$0]  %s303, 16, %s306, %s296
        $region28: #{tpu_custom_call.1} parent=15 // pred_fallthru
          _
      $region16: #{tpu_custom_call.1} parent=5 // pred_fallthru
        _
      %p309 = scmp.le.s32.totalorder 1, %s28
      %p310 = scmp.lt.s32.totalorder %s28, 5
      %p311 = pnand %p309, %p310
      %p312 = pneg %p311
      // Predicated region
      $region29: #{tpu_custom_call.1} parent=5 // pred_check
        _
      $region30: #{tpu_custom_call.1} parent=5 // pred_check_branch
        %314 = sbr.rel (%p311) target = $region32
      $region31: #{tpu_custom_call.1} parent=5 // pred_region
        %s315 = ssub.s32 %s28, 1
        %s316 = sand.u32 %s53, 1
        %s317 = scalar_lea.sflag [#allocation3], %s316
        %s318 = sand.u32 %s53, 1
        %s319 = smul.addr %s318, 128
        %s320 = scalar_lea.vmem [#allocation2], %s319
        // Predicated region
        $region33: #{tpu_custom_call.1} parent=31 // pred_check
          %p321 = pneg %p66
        $region34: #{tpu_custom_call.1} parent=31 // pred_check_branch
          %323 = sbr.rel (%p321) target = $region36
        $region35: #{tpu_custom_call.1} parent=31 // pred_region
          %324 = dma.done %s317, 2048
        $region36: #{tpu_custom_call.1} parent=31 // pred_fallthru
          _
        %s325 = sand.u32 %s33, 1
        %s326 = scalar_lea.sflag [#allocation6], %s325
        %s327 = sand.u32 %s79, 1
        %s328 = smul.addr %s327, 512
        %s329 = scalar_lea.vmem [#allocation5], %s328
        // Predicated region
        $region37: #{tpu_custom_call.1} parent=31 // pred_check
          %p330 = pneg %p92
        $region38: #{tpu_custom_call.1} parent=31 // pred_check_branch
          %332 = sbr.rel (%p330) target = $region40
        $region39: #{tpu_custom_call.1} parent=31 // pred_region
          %333 = dma.done %s326, 8192
        $region40: #{tpu_custom_call.1} parent=31 // pred_fallthru
          _
        %s334 = sand.u32 %s33, 1
        %s335 = scalar_lea.sflag [#allocation6], %s334
        %s336 = sand.u32 %s105, 1
        %s337 = scalar_lea.vmem [#allocation7], %s336
        // Predicated region
        $region41: #{tpu_custom_call.1} parent=31 // pred_check
          %p338 = pneg %p118
        $region42: #{tpu_custom_call.1} parent=31 // pred_check_branch
          %340 = sbr.rel (%p338) target = $region44
        $region43: #{tpu_custom_call.1} parent=31 // pred_region
          %341 = dma.done %s335, 16
        $region44: #{tpu_custom_call.1} parent=31 // pred_fallthru
          _
        %s342 = sand.u32 %s53, 1
        %s343 = scalar_lea.sflag [#allocation3], %s342
        %s344 = sand.u32 %s53, 1
        %s345 = smul.addr %s344, 128
        %s346 = scalar_lea.vmem [#allocation2], %s345
        %p347 = pneg %p66
        %p348 = pneg %p63
        %s349 = sand.u32 %s33, 1
        %s350 = scalar_lea.sflag [#allocation6], %s349
        %s351 = sand.u32 %s79, 1
        %s352 = smul.addr %s351, 512
        %s353 = scalar_lea.vmem [#allocation5], %s352
        %p354 = pneg %p92
        %p355 = pneg %p89
        %s356 = sand.u32 %s33, 1
        %s357 = scalar_lea.sflag [#allocation6], %s356
        %s358 = sand.u32 %s105, 1
        %s359 = scalar_lea.vmem [#allocation7], %s358
        %p360 = pneg %p118
        %p361 = pneg %p115
        %p362 = pneg %p146
        %p363 = pneg %p143
        %s364 = sand.u32 %s133, 1
        %s365 = scalar_lea.sflag [#allocation4], %s364
        %s366 = sand.u32 %s133, 1
        %s367 = smul.addr %s366, 256
        %s368 = scalar_lea.vmem [#allocation8], %s367
        %p369 = pneg %p174
        %p370 = pneg %p171
        %s371 = sand.u32 %s33, 1
        %s372 = scalar_lea.sflag [#allocation10], %s371
        %s373 = sand.u32 %s161, 1
        %s374 = smul.addr %s373, 256
        %s375 = scalar_lea.vmem [#allocation9], %s374
        %p376 = pneg %p202
        %p377 = pneg %p199
        %s378 = sand.u32 %s33, 1
        %s379 = scalar_lea.sflag [#allocation10], %s378
        %s380 = sand.u32 %s189, 1
        %s381 = smul.addr %s380, 256
        %s382 = scalar_lea.vmem [#allocation11], %s381
        %p383 = pneg %p230
        %p384 = pneg %p227
        %s385 = sand.u32 %s217, 1
        %s386 = scalar_lea.sflag [#allocation13], %s385
        %s387 = sand.u32 %s217, 1
        %s388 = smul.addr %s387, 128
        %s389 = scalar_lea.vmem [#allocation12], %s388
        %s390 = smul.u32 16, %s38
        %s391 = smul.u32 4, %s37
        %s392 = smul.u32 16, %s38
        %s393 = smul.u32 4, %s37
        %s394 = smul.u32 16, %s38
        %s395 = smul.u32 4, %s37
        %s396 = smul.u32 16, %s38
        %s397 = smul.u32 16, %s38
        %v398 = vld [vmem:[%s320] sm:$0xff]
        %v399 = vld [vmem:[%s320 + $0x8] sm:$0xff]
        %v400 = vld [vmem:[%s320 + $0x10] sm:$0xff]
        %v401 = vld [vmem:[%s320 + $0x18] sm:$0xff]
        %v402 = vld [vmem:[%s320 + $0x20] sm:$0xff]
        %v403 = vld [vmem:[%s320 + $0x28] sm:$0xff]
        %v404 = vld [vmem:[%s320 + $0x30] sm:$0xff]
        %v405 = vld [vmem:[%s320 + $0x38] sm:$0xff]
        %v406 = vld [vmem:[%s320 + $0x40] sm:$0xff]
        %v407 = vld [vmem:[%s320 + $0x48] sm:$0xff]
        %v408 = vld [vmem:[%s320 + $0x50] sm:$0xff]
        %v409 = vld [vmem:[%s320 + $0x58] sm:$0xff]
        %v410 = vld [vmem:[%s320 + $0x60] sm:$0xff]
        %v411 = vld [vmem:[%s320 + $0x68] sm:$0xff]
        %v412 = vld [vmem:[%s320 + $0x70] sm:$0xff]
        %v413 = vld [vmem:[%s320 + $0x78] sm:$0xff]
        %v414 = vld [vmem:[%s329] sm:$0xff]
        %v415 = vld [vmem:[%s329 + $0x8] sm:$0xff]
        %v416 = vld [vmem:[%s329 + $0x10] sm:$0xff]
        %v417 = vld [vmem:[%s329 + $0x18] sm:$0xff]
        %v418 = vld [vmem:[%s329 + $0x20] sm:$0xff]
        %v419 = vld [vmem:[%s329 + $0x28] sm:$0xff]
        %v420 = vld [vmem:[%s329 + $0x30] sm:$0xff]
        %v421 = vld [vmem:[%s329 + $0x38] sm:$0xff]
        %v422 = vld [vmem:[%s329 + $0x40] sm:$0xff]
        %v423 = vld [vmem:[%s329 + $0x48] sm:$0xff]
        %v424 = vld [vmem:[%s329 + $0x50] sm:$0xff]
        %v425 = vld [vmem:[%s329 + $0x58] sm:$0xff]
        %v426 = vld [vmem:[%s329 + $0x60] sm:$0xff]
        %v427 = vld [vmem:[%s329 + $0x68] sm:$0xff]
        %v428 = vld [vmem:[%s329 + $0x70] sm:$0xff]
        %v429 = vld [vmem:[%s329 + $0x78] sm:$0xff]
        %v430 = vld [vmem:[%s329 + $0x80] sm:$0xff]
        %v431 = vld [vmem:[%s329 + $0x88] sm:$0xff]
        %v432 = vld [vmem:[%s329 + $0x90] sm:$0xff]
        %v433 = vld [vmem:[%s329 + $0x98] sm:$0xff]
        %v434 = vld [vmem:[%s329 + $0xa0] sm:$0xff]
        %v435 = vld [vmem:[%s329 + $0xa8] sm:$0xff]
        %v436 = vld [vmem:[%s329 + $0xb0] sm:$0xff]
        %v437 = vld [vmem:[%s329 + $0xb8] sm:$0xff]
        %v438 = vld [vmem:[%s329 + $0xc0] sm:$0xff]
        %v439 = vld [vmem:[%s329 + $0xc8] sm:$0xff]
        %v440 = vld [vmem:[%s329 + $0xd0] sm:$0xff]
        %v441 = vld [vmem:[%s329 + $0xd8] sm:$0xff]
        %v442 = vld [vmem:[%s329 + $0xe0] sm:$0xff]
        %v443 = vld [vmem:[%s329 + $0xe8] sm:$0xff]
        %v444 = vld [vmem:[%s329 + $0xf0] sm:$0xff]
        %v445 = vld [vmem:[%s329 + $0xf8] sm:$0xff]
        %v446 = vld [vmem:[%s329 + $0x100] sm:$0xff]
        %v447 = vld [vmem:[%s329 + $0x108] sm:$0xff]
        %v448 = vld [vmem:[%s329 + $0x110] sm:$0xff]
        %v449 = vld [vmem:[%s329 + $0x118] sm:$0xff]
        %v450 = vld [vmem:[%s329 + $0x120] sm:$0xff]
        %v451 = vld [vmem:[%s329 + $0x128] sm:$0xff]
        %v452 = vld [vmem:[%s329 + $0x130] sm:$0xff]
        %v453 = vld [vmem:[%s329 + $0x138] sm:$0xff]
        %v454 = vld [vmem:[%s329 + $0x140] sm:$0xff]
        %v455 = vld [vmem:[%s329 + $0x148] sm:$0xff]
        %v456 = vld [vmem:[%s329 + $0x150] sm:$0xff]
        %v457 = vld [vmem:[%s329 + $0x158] sm:$0xff]
        %v458 = vld [vmem:[%s329 + $0x160] sm:$0xff]
        %v459 = vld [vmem:[%s329 + $0x168] sm:$0xff]
        %v460 = vld [vmem:[%s329 + $0x170] sm:$0xff]
        %v461 = vld [vmem:[%s329 + $0x178] sm:$0xff]
        %v462 = vld [vmem:[%s329 + $0x180] sm:$0xff]
        %v463 = vld [vmem:[%s329 + $0x188] sm:$0xff]
        %v464 = vld [vmem:[%s329 + $0x190] sm:$0xff]
        %v465 = vld [vmem:[%s329 + $0x198] sm:$0xff]
        %v466 = vld [vmem:[%s329 + $0x1a0] sm:$0xff]
        %v467 = vld [vmem:[%s329 + $0x1a8] sm:$0xff]
        %v468 = vld [vmem:[%s329 + $0x1b0] sm:$0xff]
        %v469 = vld [vmem:[%s329 + $0x1b8] sm:$0xff]
        %v470 = vld [vmem:[%s329 + $0x1c0] sm:$0xff]
        %v471 = vld [vmem:[%s329 + $0x1c8] sm:$0xff]
        %v472 = vld [vmem:[%s329 + $0x1d0] sm:$0xff]
        %v473 = vld [vmem:[%s329 + $0x1d8] sm:$0xff]
        %v474 = vld [vmem:[%s329 + $0x1e0] sm:$0xff]
        %v475 = vld [vmem:[%s329 + $0x1e8] sm:$0xff]
        %v476 = vld [vmem:[%s329 + $0x1f0] sm:$0xff]
        %v477 = vld [vmem:[%s329 + $0x1f8] sm:$0xff]
        %v494 = vunpack.c.l.b16 %v398
        %v495 = vunpack.c.h.b16 %v398
        %v496 = vunpack.c.l.b16 %v399
        %v497 = vunpack.c.h.b16 %v399
        %v498 = vunpack.c.l.b16 %v400
        %v499 = vunpack.c.h.b16 %v400
        %v500 = vunpack.c.l.b16 %v401
        %v501 = vunpack.c.h.b16 %v401
        %v502 = vunpack.c.l.b16 %v402
        %v503 = vunpack.c.h.b16 %v402
        %v504 = vunpack.c.l.b16 %v403
        %v505 = vunpack.c.h.b16 %v403
        %v506 = vunpack.c.l.b16 %v404
        %v507 = vunpack.c.h.b16 %v404
        %v508 = vunpack.c.l.b16 %v405
        %v509 = vunpack.c.h.b16 %v405
        %v510 = vunpack.c.l.b16 %v406
        %v511 = vunpack.c.h.b16 %v406
        %v512 = vunpack.c.l.b16 %v407
        %v513 = vunpack.c.h.b16 %v407
        %v514 = vunpack.c.l.b16 %v408
        %v515 = vunpack.c.h.b16 %v408
        %v516 = vunpack.c.l.b16 %v409
        %v517 = vunpack.c.h.b16 %v409
        %v518 = vunpack.c.l.b16 %v410
        %v519 = vunpack.c.h.b16 %v410
        %v520 = vunpack.c.l.b16 %v411
        %v521 = vunpack.c.h.b16 %v411
        %v522 = vunpack.c.l.b16 %v412
        %v523 = vunpack.c.h.b16 %v412
        %v524 = vunpack.c.l.b16 %v413
        %v525 = vunpack.c.h.b16 %v413
        %v526 = vpack.c.b16 %v496, %v494
        %v527 = vpack.c.b16 %v497, %v495
        %v528 = vpack.c.b16 %v500, %v498
        %v529 = vpack.c.b16 %v501, %v499
        %v530 = vpack.c.b16 %v504, %v502
        %v531 = vpack.c.b16 %v505, %v503
        %v532 = vpack.c.b16 %v508, %v506
        %v533 = vpack.c.b16 %v509, %v507
        %v534 = vpack.c.b16 %v512, %v510
        %v535 = vpack.c.b16 %v513, %v511
        %v536 = vpack.c.b16 %v516, %v514
        %v537 = vpack.c.b16 %v517, %v515
        %v538 = vpack.c.b16 %v520, %v518
        %v539 = vpack.c.b16 %v521, %v519
        %v540 = vpack.c.b16 %v524, %v522
        %v541 = vpack.c.b16 %v525, %v523
        %v622 = vunpack.c.l.b16 %v414
        %v623 = vunpack.c.h.b16 %v414
        %v624 = vunpack.c.l.b16 %v415
        %v625 = vunpack.c.h.b16 %v415
        %v626 = vunpack.c.l.b16 %v416
        %v627 = vunpack.c.h.b16 %v416
        %v628 = vunpack.c.l.b16 %v417
        %v629 = vunpack.c.h.b16 %v417
        %v630 = vunpack.c.l.b16 %v418
        %v631 = vunpack.c.h.b16 %v418
        %v632 = vunpack.c.l.b16 %v419
        %v633 = vunpack.c.h.b16 %v419
        %v634 = vunpack.c.l.b16 %v420
        %v635 = vunpack.c.h.b16 %v420
        %v636 = vunpack.c.l.b16 %v421
        %v637 = vunpack.c.h.b16 %v421
        %v638 = vunpack.c.l.b16 %v422
        %v639 = vunpack.c.h.b16 %v422
        %v640 = vunpack.c.l.b16 %v423
        %v641 = vunpack.c.h.b16 %v423
        %v642 = vunpack.c.l.b16 %v424
        %v643 = vunpack.c.h.b16 %v424
        %v644 = vunpack.c.l.b16 %v425
        %v645 = vunpack.c.h.b16 %v425
        %v646 = vunpack.c.l.b16 %v426
        %v647 = vunpack.c.h.b16 %v426
        %v648 = vunpack.c.l.b16 %v427
        %v649 = vunpack.c.h.b16 %v427
        %v650 = vunpack.c.l.b16 %v428
        %v651 = vunpack.c.h.b16 %v428
        %v652 = vunpack.c.l.b16 %v429
        %v653 = vunpack.c.h.b16 %v429
        %v654 = vunpack.c.l.b16 %v430
        %v655 = vunpack.c.h.b16 %v430
        %v656 = vunpack.c.l.b16 %v431
        %v657 = vunpack.c.h.b16 %v431
        %v658 = vunpack.c.l.b16 %v432
        %v659 = vunpack.c.h.b16 %v432
        %v660 = vunpack.c.l.b16 %v433
        %v661 = vunpack.c.h.b16 %v433
        %v662 = vunpack.c.l.b16 %v434
        %v663 = vunpack.c.h.b16 %v434
        %v664 = vunpack.c.l.b16 %v435
        %v665 = vunpack.c.h.b16 %v435
        %v666 = vunpack.c.l.b16 %v436
        %v667 = vunpack.c.h.b16 %v436
        %v668 = vunpack.c.l.b16 %v437
        %v669 = vunpack.c.h.b16 %v437
        %v670 = vunpack.c.l.b16 %v438
        %v671 = vunpack.c.h.b16 %v438
        %v672 = vunpack.c.l.b16 %v439
        %v673 = vunpack.c.h.b16 %v439
        %v674 = vunpack.c.l.b16 %v440
        %v675 = vunpack.c.h.b16 %v440
        %v676 = vunpack.c.l.b16 %v441
        %v677 = vunpack.c.h.b16 %v441
        %v678 = vunpack.c.l.b16 %v442
        %v679 = vunpack.c.h.b16 %v442
        %v680 = vunpack.c.l.b16 %v443
        %v681 = vunpack.c.h.b16 %v443
        %v682 = vunpack.c.l.b16 %v444
        %v683 = vunpack.c.h.b16 %v444
        %v684 = vunpack.c.l.b16 %v445
        %v685 = vunpack.c.h.b16 %v445
        %v686 = vunpack.c.l.b16 %v446
        %v687 = vunpack.c.h.b16 %v446
        %v688 = vunpack.c.l.b16 %v447
        %v689 = vunpack.c.h.b16 %v447
        %v690 = vunpack.c.l.b16 %v448
        %v691 = vunpack.c.h.b16 %v448
        %v692 = vunpack.c.l.b16 %v449
        %v693 = vunpack.c.h.b16 %v449
        %v694 = vunpack.c.l.b16 %v450
        %v695 = vunpack.c.h.b16 %v450
        %v696 = vunpack.c.l.b16 %v451
        %v697 = vunpack.c.h.b16 %v451
        %v698 = vunpack.c.l.b16 %v452
        %v699 = vunpack.c.h.b16 %v452
        %v700 = vunpack.c.l.b16 %v453
        %v701 = vunpack.c.h.b16 %v453
        %v702 = vunpack.c.l.b16 %v454
        %v703 = vunpack.c.h.b16 %v454
        %v704 = vunpack.c.l.b16 %v455
        %v705 = vunpack.c.h.b16 %v455
        %v706 = vunpack.c.l.b16 %v456
        %v707 = vunpack.c.h.b16 %v456
        %v708 = vunpack.c.l.b16 %v457
        %v709 = vunpack.c.h.b16 %v457
        %v710 = vunpack.c.l.b16 %v458
        %v711 = vunpack.c.h.b16 %v458
        %v712 = vunpack.c.l.b16 %v459
        %v713 = vunpack.c.h.b16 %v459
        %v714 = vunpack.c.l.b16 %v460
        %v715 = vunpack.c.h.b16 %v460
        %v716 = vunpack.c.l.b16 %v461
        %v717 = vunpack.c.h.b16 %v461
        %v718 = vunpack.c.l.b16 %v462
        %v719 = vunpack.c.h.b16 %v462
        %v720 = vunpack.c.l.b16 %v463
        %v721 = vunpack.c.h.b16 %v463
        %v722 = vunpack.c.l.b16 %v464
        %v723 = vunpack.c.h.b16 %v464
        %v724 = vunpack.c.l.b16 %v465
        %v725 = vunpack.c.h.b16 %v465
        %v726 = vunpack.c.l.b16 %v466
        %v727 = vunpack.c.h.b16 %v466
        %v728 = vunpack.c.l.b16 %v467
        %v729 = vunpack.c.h.b16 %v467
        %v730 = vunpack.c.l.b16 %v468
        %v731 = vunpack.c.h.b16 %v468
        %v732 = vunpack.c.l.b16 %v469
        %v733 = vunpack.c.h.b16 %v469
        %v734 = vunpack.c.l.b16 %v470
        %v735 = vunpack.c.h.b16 %v470
        %v736 = vunpack.c.l.b16 %v471
        %v737 = vunpack.c.h.b16 %v471
        %v738 = vunpack.c.l.b16 %v472
        %v739 = vunpack.c.h.b16 %v472
        %v740 = vunpack.c.l.b16 %v473
        %v741 = vunpack.c.h.b16 %v473
        %v742 = vunpack.c.l.b16 %v474
        %v743 = vunpack.c.h.b16 %v474
        %v744 = vunpack.c.l.b16 %v475
        %v745 = vunpack.c.h.b16 %v475
        %v746 = vunpack.c.l.b16 %v476
        %v747 = vunpack.c.h.b16 %v476
        %v748 = vunpack.c.l.b16 %v477
        %v749 = vunpack.c.h.b16 %v477
        %v750 = vpack.c.b16 %v626, %v622
        %v751 = vpack.c.b16 %v627, %v623
        %v752 = vpack.c.b16 %v628, %v624
        %v753 = vpack.c.b16 %v629, %v625
        %v754 = vpack.c.b16 %v634, %v630
        %v755 = vpack.c.b16 %v635, %v631
        %v756 = vpack.c.b16 %v636, %v632
        %v757 = vpack.c.b16 %v637, %v633
        %v758 = vpack.c.b16 %v642, %v638
        %v759 = vpack.c.b16 %v643, %v639
        %v760 = vpack.c.b16 %v644, %v640
        %v761 = vpack.c.b16 %v645, %v641
        %v762 = vpack.c.b16 %v650, %v646
        %v763 = vpack.c.b16 %v651, %v647
        %v764 = vpack.c.b16 %v652, %v648
        %v765 = vpack.c.b16 %v653, %v649
        %v766 = vpack.c.b16 %v658, %v654
        %v767 = vpack.c.b16 %v659, %v655
        %v768 = vpack.c.b16 %v660, %v656
        %v769 = vpack.c.b16 %v661, %v657
        %v770 = vpack.c.b16 %v666, %v662
        %v771 = vpack.c.b16 %v667, %v663
        %v772 = vpack.c.b16 %v668, %v664
        %v773 = vpack.c.b16 %v669, %v665
        %v774 = vpack.c.b16 %v674, %v670
        %v775 = vpack.c.b16 %v675, %v671
        %v776 = vpack.c.b16 %v676, %v672
        %v777 = vpack.c.b16 %v677, %v673
        %v778 = vpack.c.b16 %v682, %v678
        %v779 = vpack.c.b16 %v683, %v679
        %v780 = vpack.c.b16 %v684, %v680
        %v781 = vpack.c.b16 %v685, %v681
        %v782 = vpack.c.b16 %v690, %v686
        %v783 = vpack.c.b16 %v691, %v687
        %v784 = vpack.c.b16 %v692, %v688
        %v785 = vpack.c.b16 %v693, %v689
        %v786 = vpack.c.b16 %v698, %v694
        %v787 = vpack.c.b16 %v699, %v695
        %v788 = vpack.c.b16 %v700, %v696
        %v789 = vpack.c.b16 %v701, %v697
        %v790 = vpack.c.b16 %v706, %v702
        %v791 = vpack.c.b16 %v707, %v703
        %v792 = vpack.c.b16 %v708, %v704
        %v793 = vpack.c.b16 %v709, %v705
        %v794 = vpack.c.b16 %v714, %v710
        %v795 = vpack.c.b16 %v715, %v711
        %v796 = vpack.c.b16 %v716, %v712
        %v797 = vpack.c.b16 %v717, %v713
        %v798 = vpack.c.b16 %v722, %v718
        %v799 = vpack.c.b16 %v723, %v719
        %v800 = vpack.c.b16 %v724, %v720
        %v801 = vpack.c.b16 %v725, %v721
        %v802 = vpack.c.b16 %v730, %v726
        %v803 = vpack.c.b16 %v731, %v727
        %v804 = vpack.c.b16 %v732, %v728
        %v805 = vpack.c.b16 %v733, %v729
        %v806 = vpack.c.b16 %v738, %v734
        %v807 = vpack.c.b16 %v739, %v735
        %v808 = vpack.c.b16 %v740, %v736
        %v809 = vpack.c.b16 %v741, %v737
        %v810 = vpack.c.b16 %v746, %v742
        %v811 = vpack.c.b16 %v747, %v743
        %v812 = vpack.c.b16 %v748, %v744
        %v813 = vpack.c.b16 %v749, %v745
        %878 = vmatprep.subr.bf16.mxu0 %v751
        %879 = vmatpush1.bf16.msra.mxu0 %v750
        %880 = vmatprep.subr.bf16.mxu0 %v755
        %881 = vmatpush1.bf16.msra.mxu0 %v754
        %882 = vmatprep.subr.bf16.mxu0 %v759
        %883 = vmatpush1.bf16.msra.mxu0 %v758
        %884 = vmatprep.subr.bf16.mxu0 %v763
        %885 = vmatpush1.bf16.msra.mxu0 %v762
        %886 = vmatprep.subr.bf16.mxu0 %v767
        %887 = vmatpush1.bf16.msra.mxu0 %v766
        %888 = vmatprep.subr.bf16.mxu0 %v771
        %889 = vmatpush1.bf16.msra.mxu0 %v770
        %890 = vmatprep.subr.bf16.mxu0 %v775
        %891 = vmatpush1.bf16.msra.mxu0 %v774
        %892 = vmatprep.subr.bf16.mxu0 %v779
        %893 = vmatpush1.bf16.msra.mxu0 %v778
        %894 = vmatprep.subr.bf16.mxu0 %v783
        %895 = vmatpush1.bf16.msra.mxu0 %v782
        %896 = vmatprep.subr.bf16.mxu0 %v787
        %897 = vmatpush1.bf16.msra.mxu0 %v786
        %898 = vmatprep.subr.bf16.mxu0 %v791
        %899 = vmatpush1.bf16.msra.mxu0 %v790
        %900 = vmatprep.subr.bf16.mxu0 %v795
        %901 = vmatpush1.bf16.msra.mxu0 %v794
        %902 = vmatprep.subr.bf16.mxu0 %v799
        %903 = vmatpush1.bf16.msra.mxu0 %v798
        %904 = vmatprep.subr.bf16.mxu0 %v803
        %905 = vmatpush1.bf16.msra.mxu0 %v802
        %906 = vmatprep.subr.bf16.mxu0 %v807
        %907 = vmatpush1.bf16.msra.mxu0 %v806
        %908 = vmatprep.subr.bf16.mxu0 %v811
        %909 = vmatpush1.bf16.msra.mxu0 %v810
        %910 = vmatprep.mubr.bf16.mxu0 %v527
        %911 = vmatmul.mubr.bf16.gmra.mrb[0].mxu0 %v526
        %v912 = vpop.f32.mrb[0].mxu0
        %v913 = vadd.f32 0.0, %v912
        %v914 = vpop.f32.mrb[0].mxu0
        %v915 = vadd.f32 0.0, %v914
        %v916 = vpop.f32.mrb[0].mxu0
        %v917 = vadd.f32 0.0, %v916
        %v918 = vpop.f32.mrb[0].mxu0
        %v919 = vadd.f32 0.0, %v918
        %920 = vmatprep.mubr.bf16.mxu0 %v529
        %921 = vmatmul.mubr.bf16.gmra.mrb[0].mxu0 %v528
        %v922 = vpop.f32.mrb[0].mxu0
        %v923 = vadd.f32 0.0, %v922
        %v924 = vpop.f32.mrb[0].mxu0
        %v925 = vadd.f32 0.0, %v924
        %v926 = vpop.f32.mrb[0].mxu0
        %v927 = vadd.f32 0.0, %v926
        %v928 = vpop.f32.mrb[0].mxu0
        %v929 = vadd.f32 0.0, %v928
        %930 = vmatprep.mubr.bf16.mxu0 %v531
        %931 = vmatmul.mubr.bf16.gmra.mrb[0].mxu0 %v530
        %v932 = vpop.f32.mrb[0].mxu0
        %v933 = vadd.f32 0.0, %v932
        %v934 = vpop.f32.mrb[0].mxu0
        %v935 = vadd.f32 0.0, %v934
        %v936 = vpop.f32.mrb[0].mxu0
        %v937 = vadd.f32 0.0, %v936
        %v938 = vpop.f32.mrb[0].mxu0
        %v939 = vadd.f32 0.0, %v938
        %940 = vmatprep.mubr.bf16.mxu0 %v533
        %941 = vmatmul.mubr.bf16.gmra.mrb[0].mxu0 %v532
        %v942 = vpop.f32.mrb[0].mxu0
        %v943 = vadd.f32 0.0, %v942
        %v944 = vpop.f32.mrb[0].mxu0
        %v945 = vadd.f32 0.0, %v944
        %v946 = vpop.f32.mrb[0].mxu0
        %v947 = vadd.f32 0.0, %v946
        %v948 = vpop.f32.mrb[0].mxu0
        %v949 = vadd.f32 0.0, %v948
        %950 = vmatprep.mubr.bf16.mxu0 %v535
        %951 = vmatmul.mubr.bf16.gmra.mrb[0].mxu0 %v534
        %v952 = vpop.f32.mrb[0].mxu0
        %v953 = vadd.f32 0.0, %v952
        %v954 = vpop.f32.mrb[0].mxu0
        %v955 = vadd.f32 0.0, %v954
        %v956 = vpop.f32.mrb[0].mxu0
        %v957 = vadd.f32 0.0, %v956
        %v958 = vpop.f32.mrb[0].mxu0
        %v959 = vadd.f32 0.0, %v958
        %960 = vmatprep.mubr.bf16.mxu0 %v537
        %961 = vmatmul.mubr.bf16.gmra.mrb[0].mxu0 %v536
        %v962 = vpop.f32.mrb[0].mxu0
        %v963 = vadd.f32 0.0, %v962
        %v964 = vpop.f32.mrb[0].mxu0
        %v965 = vadd.f32 0.0, %v964
        %v966 = vpop.f32.mrb[0].mxu0
        %v967 = vadd.f32 0.0, %v966
        %v968 = vpop.f32.mrb[0].mxu0
        %v969 = vadd.f32 0.0, %v968
        %970 = vmatprep.mubr.bf16.mxu0 %v539
        %971 = vmatmul.mubr.bf16.gmra.mrb[0].mxu0 %v538
        %v972 = vpop.f32.mrb[0].mxu0
        %v973 = vadd.f32 0.0, %v972
        %v974 = vpop.f32.mrb[0].mxu0
        %v975 = vadd.f32 0.0, %v974
        %v976 = vpop.f32.mrb[0].mxu0
        %v977 = vadd.f32 0.0, %v976
        %v978 = vpop.f32.mrb[0].mxu0
        %v979 = vadd.f32 0.0, %v978
        %980 = vmatprep.mubr.bf16.mxu0 %v541
        %981 = vmatmul.mubr.bf16.gmra.mrb[0].mxu0 %v540
        %v982 = vpop.f32.mrb[0].mxu0
        %v983 = vadd.f32 0.0, %v982
        %v984 = vpop.f32.mrb[0].mxu0
        %v985 = vadd.f32 0.0, %v984
        %v986 = vpop.f32.mrb[0].mxu0
        %v987 = vadd.f32 0.0, %v986
        %v988 = vpop.f32.mrb[0].mxu0
        %v989 = vadd.f32 0.0, %v988
        %990 = vdwg.mxu0
        %991 = vmatprep.subr.bf16.mxu0 %v753
        %992 = vmatpush1.bf16.msra.mxu0 %v752
        %993 = vmatprep.subr.bf16.mxu0 %v757
        %994 = vmatpush1.bf16.msra.mxu0 %v756
        %995 = vmatprep.subr.bf16.mxu0 %v761
        %996 = vmatpush1.bf16.msra.mxu0 %v760
        %997 = vmatprep.subr.bf16.mxu0 %v765
        %998 = vmatpush1.bf16.msra.mxu0 %v764
        %999 = vmatprep.subr.bf16.mxu0 %v769
        %1000 = vmatpush1.bf16.msra.mxu0 %v768
        %1001 = vmatprep.subr.bf16.mxu0 %v773
        %1002 = vmatpush1.bf16.msra.mxu0 %v772
        %1003 = vmatprep.subr.bf16.mxu0 %v777
        %1004 = vmatpush1.bf16.msra.mxu0 %v776
        %1005 = vmatprep.subr.bf16.mxu0 %v781
        %1006 = vmatpush1.bf16.msra.mxu0 %v780
        %1007 = vmatprep.subr.bf16.mxu0 %v785
        %1008 = vmatpush1.bf16.msra.mxu0 %v784
        %1009 = vmatprep.subr.bf16.mxu0 %v789
        %1010 = vmatpush1.bf16.msra.mxu0 %v788
        %1011 = vmatprep.subr.bf16.mxu0 %v793
        %1012 = vmatpush1.bf16.msra.mxu0 %v792
        %1013 = vmatprep.subr.bf16.mxu0 %v797
        %1014 = vmatpush1.bf16.msra.mxu0 %v796
        %1015 = vmatprep.subr.bf16.mxu0 %v801
        %1016 = vmatpush1.bf16.msra.mxu0 %v800
        %1017 = vmatprep.subr.bf16.mxu0 %v805
        %1018 = vmatpush1.bf16.msra.mxu0 %v804
        %1019 = vmatprep.subr.bf16.mxu0 %v809
        %1020 = vmatpush1.bf16.msra.mxu0 %v808
        %1021 = vmatprep.subr.bf16.mxu0 %v813
        %1022 = vmatpush1.bf16.msra.mxu0 %v812
        %1023 = vmatprep.mubr.bf16.mxu0 %v527
        %1024 = vmatmul.mubr.bf16.gmra.mrb[0].mxu0 %v526
        %v1025 = vpop.f32.mrb[0].mxu0
        %v1026 = vadd.f32 0.0, %v1025
        %v1027 = vpop.f32.mrb[0].mxu0
        %v1028 = vadd.f32 0.0, %v1027
        %v1029 = vpop.f32.mrb[0].mxu0
        %v1030 = vadd.f32 0.0, %v1029
        %v1031 = vpop.f32.mrb[0].mxu0
        %v1032 = vadd.f32 0.0, %v1031
        %1033 = vmatprep.mubr.bf16.mxu0 %v529
        %1034 = vmatmul.mubr.bf16.gmra.mrb[0].mxu0 %v528
        %v1035 = vpop.f32.mrb[0].mxu0
        %v1036 = vadd.f32 0.0, %v1035
        %v1037 = vpop.f32.mrb[0].mxu0
        %v1038 = vadd.f32 0.0, %v1037
        %v1039 = vpop.f32.mrb[0].mxu0
        %v1040 = vadd.f32 0.0, %v1039
        %v1041 = vpop.f32.mrb[0].mxu0
        %v1042 = vadd.f32 0.0, %v1041
        %1043 = vmatprep.mubr.bf16.mxu0 %v531
        %1044 = vmatmul.mubr.bf16.gmra.mrb[0].mxu0 %v530
        %v1045 = vpop.f32.mrb[0].mxu0
        %v1046 = vadd.f32 0.0, %v1045
        %v1047 = vpop.f32.mrb[0].mxu0
        %v1048 = vadd.f32 0.0, %v1047
        %v1049 = vpop.f32.mrb[0].mxu0
        %v1050 = vadd.f32 0.0, %v1049
        %v1051 = vpop.f32.mrb[0].mxu0
        %v1052 = vadd.f32 0.0, %v1051
        %1053 = vmatprep.mubr.bf16.mxu0 %v533
        %1054 = vmatmul.mubr.bf16.gmra.mrb[0].mxu0 %v532
        %v1055 = vpop.f32.mrb[0].mxu0
        %v1056 = vadd.f32 0.0, %v1055
        %v1057 = vpop.f32.mrb[0].mxu0
        %v1058 = vadd.f32 0.0, %v1057
        %v1059 = vpop.f32.mrb[0].mxu0
        %v1060 = vadd.f32 0.0, %v1059
        %v1061 = vpop.f32.mrb[0].mxu0
        %v1062 = vadd.f32 0.0, %v1061
        %1063 = vmatprep.mubr.bf16.mxu0 %v535
        %1064 = vmatmul.mubr.bf16.gmra.mrb[0].mxu0 %v534
        %v1065 = vpop.f32.mrb[0].mxu0
        %v1066 = vadd.f32 0.0, %v1065
        %v1067 = vpop.f32.mrb[0].mxu0
        %v1068 = vadd.f32 0.0, %v1067
        %v1069 = vpop.f32.mrb[0].mxu0
        %v1070 = vadd.f32 0.0, %v1069
        %v1071 = vpop.f32.mrb[0].mxu0
        %v1072 = vadd.f32 0.0, %v1071
        %1073 = vmatprep.mubr.bf16.mxu0 %v537
        %1074 = vmatmul.mubr.bf16.gmra.mrb[0].mxu0 %v536
        %v1075 = vpop.f32.mrb[0].mxu0
        %v1076 = vadd.f32 0.0, %v1075
        %v1077 = vpop.f32.mrb[0].mxu0
        %v1078 = vadd.f32 0.0, %v1077
        %v1079 = vpop.f32.mrb[0].mxu0
        %v1080 = vadd.f32 0.0, %v1079
        %v1081 = vpop.f32.mrb[0].mxu0
        %v1082 = vadd.f32 0.0, %v1081
        %1083 = vmatprep.mubr.bf16.mxu0 %v539
        %1084 = vmatmul.mubr.bf16.gmra.mrb[0].mxu0 %v538
        %v1085 = vpop.f32.mrb[0].mxu0
        %v1086 = vadd.f32 0.0, %v1085
        %v1087 = vpop.f32.mrb[0].mxu0
        %v1088 = vadd.f32 0.0, %v1087
        %v1089 = vpop.f32.mrb[0].mxu0
        %v1090 = vadd.f32 0.0, %v1089
        %v1091 = vpop.f32.mrb[0].mxu0
        %v1092 = vadd.f32 0.0, %v1091
        %1093 = vmatprep.mubr.bf16.mxu0 %v541
        %1094 = vmatmul.mubr.bf16.gmra.mrb[0].mxu0 %v540
        %v1095 = vpop.f32.mrb[0].mxu0
        %v1096 = vadd.f32 0.0, %v1095
        %v1097 = vpop.f32.mrb[0].mxu0
        %v1098 = vadd.f32 0.0, %v1097
        %v1099 = vpop.f32.mrb[0].mxu0
        %v1100 = vadd.f32 0.0, %v1099
        %v1101 = vpop.f32.mrb[0].mxu0
        %v1102 = vadd.f32 0.0, %v1101
        %1103 = vdwg.mxu0
        %v1104 = vld [vmem:[%s337] sm:$0x1]
        %v1106 = vlaneseq
        %v1107 = vshrl.u32 %v1106, 7
        %v1108 = vsub.s32 0, %v1107
        %v1109 = vrot.slane %v1104, %v1108
        %v1111 = vadd.f32 %v913, %v1109
        %v1112 = vadd.f32 %v917, %v1109
        %v1113 = vadd.f32 %v923, %v1109
        %v1114 = vadd.f32 %v927, %v1109
        %v1115 = vadd.f32 %v933, %v1109
        %v1116 = vadd.f32 %v937, %v1109
        %v1117 = vadd.f32 %v943, %v1109
        %v1118 = vadd.f32 %v947, %v1109
        %v1119 = vadd.f32 %v953, %v1109
        %v1120 = vadd.f32 %v957, %v1109
        %v1121 = vadd.f32 %v963, %v1109
        %v1122 = vadd.f32 %v967, %v1109
        %v1123 = vadd.f32 %v973, %v1109
        %v1124 = vadd.f32 %v977, %v1109
        %v1125 = vadd.f32 %v983, %v1109
        %v1126 = vadd.f32 %v987, %v1109
        %v1127 = vxor.u32 %v1028, 2147483648
        %v1128 = vxor.u32 %v1032, 2147483648
        %v1129 = vxor.u32 %v1038, 2147483648
        %v1130 = vxor.u32 %v1042, 2147483648
        %v1131 = vxor.u32 %v1048, 2147483648
        %v1132 = vxor.u32 %v1052, 2147483648
        %v1133 = vxor.u32 %v1058, 2147483648
        %v1134 = vxor.u32 %v1062, 2147483648
        %v1135 = vxor.u32 %v1068, 2147483648
        %v1136 = vxor.u32 %v1072, 2147483648
        %v1137 = vxor.u32 %v1078, 2147483648
        %v1138 = vxor.u32 %v1082, 2147483648
        %v1139 = vxor.u32 %v1088, 2147483648
        %v1140 = vxor.u32 %v1092, 2147483648
        %v1141 = vxor.u32 %v1098, 2147483648
        %v1142 = vxor.u32 %v1102, 2147483648
        %v1143 = vmul.f32 %v1127, 1.442695
        %v1144 = vpow.pop %v1143
        %v1145 = vmul.f32 %v1128, 1.442695
        %v1146 = vpow.pop %v1145
        %v1147 = vmul.f32 %v1129, 1.442695
        %v1148 = vpow.pop %v1147
        %v1149 = vmul.f32 %v1130, 1.442695
        %v1150 = vpow.pop %v1149
        %v1151 = vmul.f32 %v1131, 1.442695
        %v1152 = vpow.pop %v1151
        %v1153 = vmul.f32 %v1132, 1.442695
        %v1154 = vpow.pop %v1153
        %v1155 = vmul.f32 %v1133, 1.442695
        %v1156 = vpow.pop %v1155
        %v1157 = vmul.f32 %v1134, 1.442695
        %v1158 = vpow.pop %v1157
        %v1159 = vmul.f32 %v1135, 1.442695
        %v1160 = vpow.pop %v1159
        %v1161 = vmul.f32 %v1136, 1.442695
        %v1162 = vpow.pop %v1161
        %v1163 = vmul.f32 %v1137, 1.442695
        %v1164 = vpow.pop %v1163
        %v1165 = vmul.f32 %v1138, 1.442695
        %v1166 = vpow.pop %v1165
        %v1167 = vmul.f32 %v1139, 1.442695
        %v1168 = vpow.pop %v1167
        %v1169 = vmul.f32 %v1140, 1.442695
        %v1170 = vpow.pop %v1169
        %v1171 = vmul.f32 %v1141, 1.442695
        %v1172 = vpow.pop %v1171
        %v1173 = vmul.f32 %v1142, 1.442695
        %v1174 = vpow.pop %v1173
        %v1175 = vadd.f32 %v1144, 1.0
        %v1176 = vadd.f32 %v1146, 1.0
        %v1177 = vadd.f32 %v1148, 1.0
        %v1178 = vadd.f32 %v1150, 1.0
        %v1179 = vadd.f32 %v1152, 1.0
        %v1180 = vadd.f32 %v1154, 1.0
        %v1181 = vadd.f32 %v1156, 1.0
        %v1182 = vadd.f32 %v1158, 1.0
        %v1183 = vadd.f32 %v1160, 1.0
        %v1184 = vadd.f32 %v1162, 1.0
        %v1185 = vadd.f32 %v1164, 1.0
        %v1186 = vadd.f32 %v1166, 1.0
        %v1187 = vadd.f32 %v1168, 1.0
        %v1188 = vadd.f32 %v1170, 1.0
        %v1189 = vadd.f32 %v1172, 1.0
        %v1190 = vadd.f32 %v1174, 1.0
        %v1191 = vrcp.pop %v1175
        %v1192 = vmul.f32 1.0, %v1191
        %v1193 = vrcp.pop %v1176
        %v1194 = vmul.f32 1.0, %v1193
        %v1195 = vrcp.pop %v1177
        %v1196 = vmul.f32 1.0, %v1195
        %v1197 = vrcp.pop %v1178
        %v1198 = vmul.f32 1.0, %v1197
        %v1199 = vrcp.pop %v1179
        %v1200 = vmul.f32 1.0, %v1199
        %v1201 = vrcp.pop %v1180
        %v1202 = vmul.f32 1.0, %v1201
        %v1203 = vrcp.pop %v1181
        %v1204 = vmul.f32 1.0, %v1203
        %v1205 = vrcp.pop %v1182
        %v1206 = vmul.f32 1.0, %v1205
        %v1207 = vrcp.pop %v1183
        %v1208 = vmul.f32 1.0, %v1207
        %v1209 = vrcp.pop %v1184
        %v1210 = vmul.f32 1.0, %v1209
        %v1211 = vrcp.pop %v1185
        %v1212 = vmul.f32 1.0, %v1211
        %v1213 = vrcp.pop %v1186
        %v1214 = vmul.f32 1.0, %v1213
        %v1215 = vrcp.pop %v1187
        %v1216 = vmul.f32 1.0, %v1215
        %v1217 = vrcp.pop %v1188
        %v1218 = vmul.f32 1.0, %v1217
        %v1219 = vrcp.pop %v1189
        %v1220 = vmul.f32 1.0, %v1219
        %v1221 = vrcp.pop %v1190
        %v1222 = vmul.f32 1.0, %v1221
        %1223 = vst [vmem:[%s389] sm:$0xff] %v1192
        %1224 = vst [vmem:[%s389 + $0x8] sm:$0xff] %v1194
        %1225 = vst [vmem:[%s389 + $0x10] sm:$0xff] %v1196
        %1226 = vst [vmem:[%s389 + $0x18] sm:$0xff] %v1198
        %1227 = vst [vmem:[%s389 + $0x20] sm:$0xff] %v1200
        %1228 = vst [vmem:[%s389 + $0x28] sm:$0xff] %v1202
        %1229 = vst [vmem:[%s389 + $0x30] sm:$0xff] %v1204
        %1230 = vst [vmem:[%s389 + $0x38] sm:$0xff] %v1206
        %1231 = vst [vmem:[%s389 + $0x40] sm:$0xff] %v1208
        %1232 = vst [vmem:[%s389 + $0x48] sm:$0xff] %v1210
        %1233 = vst [vmem:[%s389 + $0x50] sm:$0xff] %v1212
        %1234 = vst [vmem:[%s389 + $0x58] sm:$0xff] %v1214
        %1235 = vst [vmem:[%s389 + $0x60] sm:$0xff] %v1216
        %1236 = vst [vmem:[%s389 + $0x68] sm:$0xff] %v1218
        %1237 = vst [vmem:[%s389 + $0x70] sm:$0xff] %v1220
        %1238 = vst [vmem:[%s389 + $0x78] sm:$0xff] %v1222
        %v1239 = vpack.c.bf16 %v1112, %v1111
        %v1240 = vpack.c.bf16 %v1114, %v1113
        %v1241 = vpack.c.bf16 %v1116, %v1115
        %v1242 = vpack.c.bf16 %v1118, %v1117
        %v1243 = vpack.c.bf16 %v1120, %v1119
        %v1244 = vpack.c.bf16 %v1122, %v1121
        %v1245 = vpack.c.bf16 %v1124, %v1123
        %v1246 = vpack.c.bf16 %v1126, %v1125
        %v1255 = vunpack.c.l.b16 %v1239
        %v1256 = vunpack.c.h.b16 %v1239
        %v1257 = vunpack.c.l.b16 %v1240
        %v1258 = vunpack.c.h.b16 %v1240
        %v1259 = vunpack.c.l.b16 %v1241
        %v1260 = vunpack.c.h.b16 %v1241
        %v1261 = vunpack.c.l.b16 %v1242
        %v1262 = vunpack.c.h.b16 %v1242
        %v1263 = vunpack.c.l.b16 %v1243
        %v1264 = vunpack.c.h.b16 %v1243
        %v1265 = vunpack.c.l.b16 %v1244
        %v1266 = vunpack.c.h.b16 %v1244
        %v1267 = vunpack.c.l.b16 %v1245
        %v1268 = vunpack.c.h.b16 %v1245
        %v1269 = vunpack.c.l.b16 %v1246
        %v1270 = vunpack.c.h.b16 %v1246
        %v1271 = vpack.c.b16 %v1255, %v1255
        %v1272 = vpack.c.b16 %v1256, %v1256
        %v1273 = vpack.c.b16 %v1257, %v1257
        %v1274 = vpack.c.b16 %v1258, %v1258
        %v1275 = vpack.c.b16 %v1259, %v1259
        %v1276 = vpack.c.b16 %v1260, %v1260
        %v1277 = vpack.c.b16 %v1261, %v1261
        %v1278 = vpack.c.b16 %v1262, %v1262
        %v1279 = vpack.c.b16 %v1263, %v1263
        %v1280 = vpack.c.b16 %v1264, %v1264
        %v1281 = vpack.c.b16 %v1265, %v1265
        %v1282 = vpack.c.b16 %v1266, %v1266
        %v1283 = vpack.c.b16 %v1267, %v1267
        %v1284 = vpack.c.b16 %v1268, %v1268
        %v1285 = vpack.c.b16 %v1269, %v1269
        %v1286 = vpack.c.b16 %v1270, %v1270
        %vm1303 = vcmask 257024
        %1304 = vst.msk [vmem:[%s368] sm:$0xf] %vm1303, %v1271
        %1305 = vst.msk [vmem:[%s368 + $0x4] sm:$0xf] %vm1303, %v1272
        %1306 = vst.msk [vmem:[%s368 + $0x8] sm:$0xf] %vm1303, %v1273
        %1307 = vst.msk [vmem:[%s368 + $0xc] sm:$0xf] %vm1303, %v1274
        %1308 = vst.msk [vmem:[%s368 + $0x10] sm:$0xf] %vm1303, %v1275
        %1309 = vst.msk [vmem:[%s368 + $0x14] sm:$0xf] %vm1303, %v1276
        %1310 = vst.msk [vmem:[%s368 + $0x18] sm:$0xf] %vm1303, %v1277
        %1311 = vst.msk [vmem:[%s368 + $0x1c] sm:$0xf] %vm1303, %v1278
        %1312 = vst.msk [vmem:[%s368 + $0x20] sm:$0xf] %vm1303, %v1279
        %1313 = vst.msk [vmem:[%s368 + $0x24] sm:$0xf] %vm1303, %v1280
        %1314 = vst.msk [vmem:[%s368 + $0x28] sm:$0xf] %vm1303, %v1281
        %1315 = vst.msk [vmem:[%s368 + $0x2c] sm:$0xf] %vm1303, %v1282
        %1316 = vst.msk [vmem:[%s368 + $0x30] sm:$0xf] %vm1303, %v1283
        %1317 = vst.msk [vmem:[%s368 + $0x34] sm:$0xf] %vm1303, %v1284
        %1318 = vst.msk [vmem:[%s368 + $0x38] sm:$0xf] %vm1303, %v1285
        %1319 = vst.msk [vmem:[%s368 + $0x3c] sm:$0xf] %vm1303, %v1286
        %v1320 = vpack.c.bf16 %v919, %v915
        %v1321 = vpack.c.bf16 %v929, %v925
        %v1322 = vpack.c.bf16 %v939, %v935
        %v1323 = vpack.c.bf16 %v949, %v945
        %v1324 = vpack.c.bf16 %v959, %v955
        %v1325 = vpack.c.bf16 %v969, %v965
        %v1326 = vpack.c.bf16 %v979, %v975
        %v1327 = vpack.c.bf16 %v989, %v985
        %v1336 = vunpack.c.l.b16 %v1320
        %v1337 = vunpack.c.h.b16 %v1320
        %v1338 = vunpack.c.l.b16 %v1321
        %v1339 = vunpack.c.h.b16 %v1321
        %v1340 = vunpack.c.l.b16 %v1322
        %v1341 = vunpack.c.h.b16 %v1322
        %v1342 = vunpack.c.l.b16 %v1323
        %v1343 = vunpack.c.h.b16 %v1323
        %v1344 = vunpack.c.l.b16 %v1324
        %v1345 = vunpack.c.h.b16 %v1324
        %v1346 = vunpack.c.l.b16 %v1325
        %v1347 = vunpack.c.h.b16 %v1325
        %v1348 = vunpack.c.l.b16 %v1326
        %v1349 = vunpack.c.h.b16 %v1326
        %v1350 = vunpack.c.l.b16 %v1327
        %v1351 = vunpack.c.h.b16 %v1327
        %v1352 = vpack.c.b16 %v1336, %v1336
        %v1353 = vpack.c.b16 %v1337, %v1337
        %v1354 = vpack.c.b16 %v1338, %v1338
        %v1355 = vpack.c.b16 %v1339, %v1339
        %v1356 = vpack.c.b16 %v1340, %v1340
        %v1357 = vpack.c.b16 %v1341, %v1341
        %v1358 = vpack.c.b16 %v1342, %v1342
        %v1359 = vpack.c.b16 %v1343, %v1343
        %v1360 = vpack.c.b16 %v1344, %v1344
        %v1361 = vpack.c.b16 %v1345, %v1345
        %v1362 = vpack.c.b16 %v1346, %v1346
        %v1363 = vpack.c.b16 %v1347, %v1347
        %v1364 = vpack.c.b16 %v1348, %v1348
        %v1365 = vpack.c.b16 %v1349, %v1349
        %v1366 = vpack.c.b16 %v1350, %v1350
        %v1367 = vpack.c.b16 %v1351, %v1351
        %1384 = vst.msk [vmem:[%s375] sm:$0xf] %vm1303, %v1352
        %1385 = vst.msk [vmem:[%s375 + $0x4] sm:$0xf] %vm1303, %v1353
        %1386 = vst.msk [vmem:[%s375 + $0x8] sm:$0xf] %vm1303, %v1354
        %1387 = vst.msk [vmem:[%s375 + $0xc] sm:$0xf] %vm1303, %v1355
        %1388 = vst.msk [vmem:[%s375 + $0x10] sm:$0xf] %vm1303, %v1356
        %1389 = vst.msk [vmem:[%s375 + $0x14] sm:$0xf] %vm1303, %v1357
        %1390 = vst.msk [vmem:[%s375 + $0x18] sm:$0xf] %vm1303, %v1358
        %1391 = vst.msk [vmem:[%s375 + $0x1c] sm:$0xf] %vm1303, %v1359
        %1392 = vst.msk [vmem:[%s375 + $0x20] sm:$0xf] %vm1303, %v1360
        %1393 = vst.msk [vmem:[%s375 + $0x24] sm:$0xf] %vm1303, %v1361
        %1394 = vst.msk [vmem:[%s375 + $0x28] sm:$0xf] %vm1303, %v1362
        %1395 = vst.msk [vmem:[%s375 + $0x2c] sm:$0xf] %vm1303, %v1363
        %1396 = vst.msk [vmem:[%s375 + $0x30] sm:$0xf] %vm1303, %v1364
        %1397 = vst.msk [vmem:[%s375 + $0x34] sm:$0xf] %vm1303, %v1365
        %1398 = vst.msk [vmem:[%s375 + $0x38] sm:$0xf] %vm1303, %v1366
        %1399 = vst.msk [vmem:[%s375 + $0x3c] sm:$0xf] %vm1303, %v1367
        %v1400 = vpack.c.bf16 %v1030, %v1026
        %v1401 = vpack.c.bf16 %v1040, %v1036
        %v1402 = vpack.c.bf16 %v1050, %v1046
        %v1403 = vpack.c.bf16 %v1060, %v1056
        %v1404 = vpack.c.bf16 %v1070, %v1066
        %v1405 = vpack.c.bf16 %v1080, %v1076
        %v1406 = vpack.c.bf16 %v1090, %v1086
        %v1407 = vpack.c.bf16 %v1100, %v1096
        %v1416 = vunpack.c.l.b16 %v1400
        %v1417 = vunpack.c.h.b16 %v1400
        %v1418 = vunpack.c.l.b16 %v1401
        %v1419 = vunpack.c.h.b16 %v1401
        %v1420 = vunpack.c.l.b16 %v1402
        %v1421 = vunpack.c.h.b16 %v1402
        %v1422 = vunpack.c.l.b16 %v1403
        %v1423 = vunpack.c.h.b16 %v1403
        %v1424 = vunpack.c.l.b16 %v1404
        %v1425 = vunpack.c.h.b16 %v1404
        %v1426 = vunpack.c.l.b16 %v1405
        %v1427 = vunpack.c.h.b16 %v1405
        %v1428 = vunpack.c.l.b16 %v1406
        %v1429 = vunpack.c.h.b16 %v1406
        %v1430 = vunpack.c.l.b16 %v1407
        %v1431 = vunpack.c.h.b16 %v1407
        %v1432 = vpack.c.b16 %v1416, %v1416
        %v1433 = vpack.c.b16 %v1417, %v1417
        %v1434 = vpack.c.b16 %v1418, %v1418
        %v1435 = vpack.c.b16 %v1419, %v1419
        %v1436 = vpack.c.b16 %v1420, %v1420
        %v1437 = vpack.c.b16 %v1421, %v1421
        %v1438 = vpack.c.b16 %v1422, %v1422
        %v1439 = vpack.c.b16 %v1423, %v1423
        %v1440 = vpack.c.b16 %v1424, %v1424
        %v1441 = vpack.c.b16 %v1425, %v1425
        %v1442 = vpack.c.b16 %v1426, %v1426
        %v1443 = vpack.c.b16 %v1427, %v1427
        %v1444 = vpack.c.b16 %v1428, %v1428
        %v1445 = vpack.c.b16 %v1429, %v1429
        %v1446 = vpack.c.b16 %v1430, %v1430
        %v1447 = vpack.c.b16 %v1431, %v1431
        %1464 = vst.msk [vmem:[%s382] sm:$0xf] %vm1303, %v1432
        %1465 = vst.msk [vmem:[%s382 + $0x4] sm:$0xf] %vm1303, %v1433
        %1466 = vst.msk [vmem:[%s382 + $0x8] sm:$0xf] %vm1303, %v1434
        %1467 = vst.msk [vmem:[%s382 + $0xc] sm:$0xf] %vm1303, %v1435
        %1468 = vst.msk [vmem:[%s382 + $0x10] sm:$0xf] %vm1303, %v1436
        %1469 = vst.msk [vmem:[%s382 + $0x14] sm:$0xf] %vm1303, %v1437
        %1470 = vst.msk [vmem:[%s382 + $0x18] sm:$0xf] %vm1303, %v1438
        %1471 = vst.msk [vmem:[%s382 + $0x1c] sm:$0xf] %vm1303, %v1439
        %1472 = vst.msk [vmem:[%s382 + $0x20] sm:$0xf] %vm1303, %v1440
        %1473 = vst.msk [vmem:[%s382 + $0x24] sm:$0xf] %vm1303, %v1441
        %1474 = vst.msk [vmem:[%s382 + $0x28] sm:$0xf] %vm1303, %v1442
        %1475 = vst.msk [vmem:[%s382 + $0x2c] sm:$0xf] %vm1303, %v1443
        %1476 = vst.msk [vmem:[%s382 + $0x30] sm:$0xf] %vm1303, %v1444
        %1477 = vst.msk [vmem:[%s382 + $0x34] sm:$0xf] %vm1303, %v1445
        %1478 = vst.msk [vmem:[%s382 + $0x38] sm:$0xf] %vm1303, %v1446
        %1479 = vst.msk [vmem:[%s382 + $0x3c] sm:$0xf] %vm1303, %v1447
        %1480 = vrot.lane.b32.xlu0 %v1271, 96
        %v1481 = vpop.permute.xlu0 %1480
        %1482 = vrot.lane.b32.xlu0 %v1272, 96
        %v1483 = vpop.permute.xlu0 %1482
        %1484 = vrot.lane.b32.xlu0 %v1273, 96
        %v1485 = vpop.permute.xlu0 %1484
        %1486 = vrot.lane.b32.xlu0 %v1274, 96
        %v1487 = vpop.permute.xlu0 %1486
        %1488 = vrot.lane.b32.xlu0 %v1275, 96
        %v1489 = vpop.permute.xlu0 %1488
        %1490 = vrot.lane.b32.xlu0 %v1276, 96
        %v1491 = vpop.permute.xlu0 %1490
        %1492 = vrot.lane.b32.xlu0 %v1277, 96
        %v1493 = vpop.permute.xlu0 %1492
        %1494 = vrot.lane.b32.xlu0 %v1278, 96
        %v1495 = vpop.permute.xlu0 %1494
        %1496 = vrot.lane.b32.xlu0 %v1279, 96
        %v1497 = vpop.permute.xlu0 %1496
        %1498 = vrot.lane.b32.xlu0 %v1280, 96
        %v1499 = vpop.permute.xlu0 %1498
        %1500 = vrot.lane.b32.xlu0 %v1281, 96
        %v1501 = vpop.permute.xlu0 %1500
        %1502 = vrot.lane.b32.xlu0 %v1282, 96
        %v1503 = vpop.permute.xlu0 %1502
        %1504 = vrot.lane.b32.xlu0 %v1283, 96
        %v1505 = vpop.permute.xlu0 %1504
        %1506 = vrot.lane.b32.xlu0 %v1284, 96
        %v1507 = vpop.permute.xlu0 %1506
        %1508 = vrot.lane.b32.xlu0 %v1285, 96
        %v1509 = vpop.permute.xlu0 %1508
        %1510 = vrot.lane.b32.xlu0 %v1286, 96
        %v1511 = vpop.permute.xlu0 %1510
        %s1528 = scalar_lea.vmem %s368, 64 [#allocation8]
        %1529 = vst.msk [vmem:[%s1528] sm:$0xf] %vm1303, %v1481
        %1530 = vst.msk [vmem:[%s1528 + $0x4] sm:$0xf] %vm1303, %v1483
        %1531 = vst.msk [vmem:[%s1528 + $0x8] sm:$0xf] %vm1303, %v1485
        %1532 = vst.msk [vmem:[%s1528 + $0xc] sm:$0xf] %vm1303, %v1487
        %1533 = vst.msk [vmem:[%s1528 + $0x10] sm:$0xf] %vm1303, %v1489
        %1534 = vst.msk [vmem:[%s1528 + $0x14] sm:$0xf] %vm1303, %v1491
        %1535 = vst.msk [vmem:[%s1528 + $0x18] sm:$0xf] %vm1303, %v1493
        %1536 = vst.msk [vmem:[%s1528 + $0x1c] sm:$0xf] %vm1303, %v1495
        %1537 = vst.msk [vmem:[%s1528 + $0x20] sm:$0xf] %vm1303, %v1497
        %1538 = vst.msk [vmem:[%s1528 + $0x24] sm:$0xf] %vm1303, %v1499
        %1539 = vst.msk [vmem:[%s1528 + $0x28] sm:$0xf] %vm1303, %v1501
        %1540 = vst.msk [vmem:[%s1528 + $0x2c] sm:$0xf] %vm1303, %v1503
        %1541 = vst.msk [vmem:[%s1528 + $0x30] sm:$0xf] %vm1303, %v1505
        %1542 = vst.msk [vmem:[%s1528 + $0x34] sm:$0xf] %vm1303, %v1507
        %1543 = vst.msk [vmem:[%s1528 + $0x38] sm:$0xf] %vm1303, %v1509
        %1544 = vst.msk [vmem:[%s1528 + $0x3c] sm:$0xf] %vm1303, %v1511
        %1545 = vrot.lane.b32.xlu0 %v1352, 96
        %v1546 = vpop.permute.xlu0 %1545
        %1547 = vrot.lane.b32.xlu0 %v1353, 96
        %v1548 = vpop.permute.xlu0 %1547
        %1549 = vrot.lane.b32.xlu0 %v1354, 96
        %v1550 = vpop.permute.xlu0 %1549
        %1551 = vrot.lane.b32.xlu0 %v1355, 96
        %v1552 = vpop.permute.xlu0 %1551
        %1553 = vrot.lane.b32.xlu0 %v1356, 96
        %v1554 = vpop.permute.xlu0 %1553
        %1555 = vrot.lane.b32.xlu0 %v1357, 96
        %v1556 = vpop.permute.xlu0 %1555
        %1557 = vrot.lane.b32.xlu0 %v1358, 96
        %v1558 = vpop.permute.xlu0 %1557
        %1559 = vrot.lane.b32.xlu0 %v1359, 96
        %v1560 = vpop.permute.xlu0 %1559
        %1561 = vrot.lane.b32.xlu0 %v1360, 96
        %v1562 = vpop.permute.xlu0 %1561
        %1563 = vrot.lane.b32.xlu0 %v1361, 96
        %v1564 = vpop.permute.xlu0 %1563
        %1565 = vrot.lane.b32.xlu0 %v1362, 96
        %v1566 = vpop.permute.xlu0 %1565
        %1567 = vrot.lane.b32.xlu0 %v1363, 96
        %v1568 = vpop.permute.xlu0 %1567
        %1569 = vrot.lane.b32.xlu0 %v1364, 96
        %v1570 = vpop.permute.xlu0 %1569
        %1571 = vrot.lane.b32.xlu0 %v1365, 96
        %v1572 = vpop.permute.xlu0 %1571
        %1573 = vrot.lane.b32.xlu0 %v1366, 96
        %v1574 = vpop.permute.xlu0 %1573
        %1575 = vrot.lane.b32.xlu0 %v1367, 96
        %v1576 = vpop.permute.xlu0 %1575
        %s1593 = scalar_lea.vmem %s375, 64 [#allocation9]
        %1594 = vst.msk [vmem:[%s1593] sm:$0xf] %vm1303, %v1546
        %1595 = vst.msk [vmem:[%s1593 + $0x4] sm:$0xf] %vm1303, %v1548
        %1596 = vst.msk [vmem:[%s1593 + $0x8] sm:$0xf] %vm1303, %v1550
        %1597 = vst.msk [vmem:[%s1593 + $0xc] sm:$0xf] %vm1303, %v1552
        %1598 = vst.msk [vmem:[%s1593 + $0x10] sm:$0xf] %vm1303, %v1554
        %1599 = vst.msk [vmem:[%s1593 + $0x14] sm:$0xf] %vm1303, %v1556
        %1600 = vst.msk [vmem:[%s1593 + $0x18] sm:$0xf] %vm1303, %v1558
        %1601 = vst.msk [vmem:[%s1593 + $0x1c] sm:$0xf] %vm1303, %v1560
        %1602 = vst.msk [vmem:[%s1593 + $0x20] sm:$0xf] %vm1303, %v1562
        %1603 = vst.msk [vmem:[%s1593 + $0x24] sm:$0xf] %vm1303, %v1564
        %1604 = vst.msk [vmem:[%s1593 + $0x28] sm:$0xf] %vm1303, %v1566
        %1605 = vst.msk [vmem:[%s1593 + $0x2c] sm:$0xf] %vm1303, %v1568
        %1606 = vst.msk [vmem:[%s1593 + $0x30] sm:$0xf] %vm1303, %v1570
        %1607 = vst.msk [vmem:[%s1593 + $0x34] sm:$0xf] %vm1303, %v1572
        %1608 = vst.msk [vmem:[%s1593 + $0x38] sm:$0xf] %vm1303, %v1574
        %1609 = vst.msk [vmem:[%s1593 + $0x3c] sm:$0xf] %vm1303, %v1576
        %1610 = vrot.lane.b32.xlu0 %v1432, 96
        %v1611 = vpop.permute.xlu0 %1610
        %1612 = vrot.lane.b32.xlu0 %v1433, 96
        %v1613 = vpop.permute.xlu0 %1612
        %1614 = vrot.lane.b32.xlu0 %v1434, 96
        %v1615 = vpop.permute.xlu0 %1614
        %1616 = vrot.lane.b32.xlu0 %v1435, 96
        %v1617 = vpop.permute.xlu0 %1616
        %1618 = vrot.lane.b32.xlu0 %v1436, 96
        %v1619 = vpop.permute.xlu0 %1618
        %1620 = vrot.lane.b32.xlu0 %v1437, 96
        %v1621 = vpop.permute.xlu0 %1620
        %1622 = vrot.lane.b32.xlu0 %v1438, 96
        %v1623 = vpop.permute.xlu0 %1622
        %1624 = vrot.lane.b32.xlu0 %v1439, 96
        %v1625 = vpop.permute.xlu0 %1624
        %1626 = vrot.lane.b32.xlu0 %v1440, 96
        %v1627 = vpop.permute.xlu0 %1626
        %1628 = vrot.lane.b32.xlu0 %v1441, 96
        %v1629 = vpop.permute.xlu0 %1628
        %1630 = vrot.lane.b32.xlu0 %v1442, 96
        %v1631 = vpop.permute.xlu0 %1630
        %1632 = vrot.lane.b32.xlu0 %v1443, 96
        %v1633 = vpop.permute.xlu0 %1632
        %1634 = vrot.lane.b32.xlu0 %v1444, 96
        %v1635 = vpop.permute.xlu0 %1634
        %1636 = vrot.lane.b32.xlu0 %v1445, 96
        %v1637 = vpop.permute.xlu0 %1636
        %1638 = vrot.lane.b32.xlu0 %v1446, 96
        %v1639 = vpop.permute.xlu0 %1638
        %1640 = vrot.lane.b32.xlu0 %v1447, 96
        %v1641 = vpop.permute.xlu0 %1640
        %s1658 = scalar_lea.vmem %s382, 64 [#allocation11]
        %1659 = vst.msk [vmem:[%s1658] sm:$0xf] %vm1303, %v1611
        %1660 = vst.msk [vmem:[%s1658 + $0x4] sm:$0xf] %vm1303, %v1613
        %1661 = vst.msk [vmem:[%s1658 + $0x8] sm:$0xf] %vm1303, %v1615
        %1662 = vst.msk [vmem:[%s1658 + $0xc] sm:$0xf] %vm1303, %v1617
        %1663 = vst.msk [vmem:[%s1658 + $0x10] sm:$0xf] %vm1303, %v1619
        %1664 = vst.msk [vmem:[%s1658 + $0x14] sm:$0xf] %vm1303, %v1621
        %1665 = vst.msk [vmem:[%s1658 + $0x18] sm:$0xf] %vm1303, %v1623
        %1666 = vst.msk [vmem:[%s1658 + $0x1c] sm:$0xf] %vm1303, %v1625
        %1667 = vst.msk [vmem:[%s1658 + $0x20] sm:$0xf] %vm1303, %v1627
        %1668 = vst.msk [vmem:[%s1658 + $0x24] sm:$0xf] %vm1303, %v1629
        %1669 = vst.msk [vmem:[%s1658 + $0x28] sm:$0xf] %vm1303, %v1631
        %1670 = vst.msk [vmem:[%s1658 + $0x2c] sm:$0xf] %vm1303, %v1633
        %1671 = vst.msk [vmem:[%s1658 + $0x30] sm:$0xf] %vm1303, %v1635
        %1672 = vst.msk [vmem:[%s1658 + $0x34] sm:$0xf] %vm1303, %v1637
        %1673 = vst.msk [vmem:[%s1658 + $0x38] sm:$0xf] %vm1303, %v1639
        %1674 = vst.msk [vmem:[%s1658 + $0x3c] sm:$0xf] %vm1303, %v1641
        %1675 = vrot.lane.b32.xlu0 %v1271, 64
        %v1676 = vpop.permute.xlu0 %1675
        %1677 = vrot.lane.b32.xlu0 %v1272, 64
        %v1678 = vpop.permute.xlu0 %1677
        %1679 = vrot.lane.b32.xlu0 %v1273, 64
        %v1680 = vpop.permute.xlu0 %1679
        %1681 = vrot.lane.b32.xlu0 %v1274, 64
        %v1682 = vpop.permute.xlu0 %1681
        %1683 = vrot.lane.b32.xlu0 %v1275, 64
        %v1684 = vpop.permute.xlu0 %1683
        %1685 = vrot.lane.b32.xlu0 %v1276, 64
        %v1686 = vpop.permute.xlu0 %1685
        %1687 = vrot.lane.b32.xlu0 %v1277, 64
        %v1688 = vpop.permute.xlu0 %1687
        %1689 = vrot.lane.b32.xlu0 %v1278, 64
        %v1690 = vpop.permute.xlu0 %1689
        %1691 = vrot.lane.b32.xlu0 %v1279, 64
        %v1692 = vpop.permute.xlu0 %1691
        %1693 = vrot.lane.b32.xlu0 %v1280, 64
        %v1694 = vpop.permute.xlu0 %1693
        %1695 = vrot.lane.b32.xlu0 %v1281, 64
        %v1696 = vpop.permute.xlu0 %1695
        %1697 = vrot.lane.b32.xlu0 %v1282, 64
        %v1698 = vpop.permute.xlu0 %1697
        %1699 = vrot.lane.b32.xlu0 %v1283, 64
        %v1700 = vpop.permute.xlu0 %1699
        %1701 = vrot.lane.b32.xlu0 %v1284, 64
        %v1702 = vpop.permute.xlu0 %1701
        %1703 = vrot.lane.b32.xlu0 %v1285, 64
        %v1704 = vpop.permute.xlu0 %1703
        %1705 = vrot.lane.b32.xlu0 %v1286, 64
        %v1706 = vpop.permute.xlu0 %1705
        %s1723 = scalar_lea.vmem %s368, 128 [#allocation8]
        %1724 = vst.msk [vmem:[%s1723] sm:$0xf] %vm1303, %v1676
        %1725 = vst.msk [vmem:[%s1723 + $0x4] sm:$0xf] %vm1303, %v1678
        %1726 = vst.msk [vmem:[%s1723 + $0x8] sm:$0xf] %vm1303, %v1680
        %1727 = vst.msk [vmem:[%s1723 + $0xc] sm:$0xf] %vm1303, %v1682
        %1728 = vst.msk [vmem:[%s1723 + $0x10] sm:$0xf] %vm1303, %v1684
        %1729 = vst.msk [vmem:[%s1723 + $0x14] sm:$0xf] %vm1303, %v1686
        %1730 = vst.msk [vmem:[%s1723 + $0x18] sm:$0xf] %vm1303, %v1688
        %1731 = vst.msk [vmem:[%s1723 + $0x1c] sm:$0xf] %vm1303, %v1690
        %1732 = vst.msk [vmem:[%s1723 + $0x20] sm:$0xf] %vm1303, %v1692
        %1733 = vst.msk [vmem:[%s1723 + $0x24] sm:$0xf] %vm1303, %v1694
        %1734 = vst.msk [vmem:[%s1723 + $0x28] sm:$0xf] %vm1303, %v1696
        %1735 = vst.msk [vmem:[%s1723 + $0x2c] sm:$0xf] %vm1303, %v1698
        %1736 = vst.msk [vmem:[%s1723 + $0x30] sm:$0xf] %vm1303, %v1700
        %1737 = vst.msk [vmem:[%s1723 + $0x34] sm:$0xf] %vm1303, %v1702
        %1738 = vst.msk [vmem:[%s1723 + $0x38] sm:$0xf] %vm1303, %v1704
        %1739 = vst.msk [vmem:[%s1723 + $0x3c] sm:$0xf] %vm1303, %v1706
        %1740 = vrot.lane.b32.xlu0 %v1352, 64
        %v1741 = vpop.permute.xlu0 %1740
        %1742 = vrot.lane.b32.xlu0 %v1353, 64
        %v1743 = vpop.permute.xlu0 %1742
        %1744 = vrot.lane.b32.xlu0 %v1354, 64
        %v1745 = vpop.permute.xlu0 %1744
        %1746 = vrot.lane.b32.xlu0 %v1355, 64
        %v1747 = vpop.permute.xlu0 %1746
        %1748 = vrot.lane.b32.xlu0 %v1356, 64
        %v1749 = vpop.permute.xlu0 %1748
        %1750 = vrot.lane.b32.xlu0 %v1357, 64
        %v1751 = vpop.permute.xlu0 %1750
        %1752 = vrot.lane.b32.xlu0 %v1358, 64
        %v1753 = vpop.permute.xlu0 %1752
        %1754 = vrot.lane.b32.xlu0 %v1359, 64
        %v1755 = vpop.permute.xlu0 %1754
        %1756 = vrot.lane.b32.xlu0 %v1360, 64
        %v1757 = vpop.permute.xlu0 %1756
        %1758 = vrot.lane.b32.xlu0 %v1361, 64
        %v1759 = vpop.permute.xlu0 %1758
        %1760 = vrot.lane.b32.xlu0 %v1362, 64
        %v1761 = vpop.permute.xlu0 %1760
        %1762 = vrot.lane.b32.xlu0 %v1363, 64
        %v1763 = vpop.permute.xlu0 %1762
        %1764 = vrot.lane.b32.xlu0 %v1364, 64
        %v1765 = vpop.permute.xlu0 %1764
        %1766 = vrot.lane.b32.xlu0 %v1365, 64
        %v1767 = vpop.permute.xlu0 %1766
        %1768 = vrot.lane.b32.xlu0 %v1366, 64
        %v1769 = vpop.permute.xlu0 %1768
        %1770 = vrot.lane.b32.xlu0 %v1367, 64
        %v1771 = vpop.permute.xlu0 %1770
        %s1788 = scalar_lea.vmem %s375, 128 [#allocation9]
        %1789 = vst.msk [vmem:[%s1788] sm:$0xf] %vm1303, %v1741
        %1790 = vst.msk [vmem:[%s1788 + $0x4] sm:$0xf] %vm1303, %v1743
        %1791 = vst.msk [vmem:[%s1788 + $0x8] sm:$0xf] %vm1303, %v1745
        %1792 = vst.msk [vmem:[%s1788 + $0xc] sm:$0xf] %vm1303, %v1747
        %1793 = vst.msk [vmem:[%s1788 + $0x10] sm:$0xf] %vm1303, %v1749
        %1794 = vst.msk [vmem:[%s1788 + $0x14] sm:$0xf] %vm1303, %v1751
        %1795 = vst.msk [vmem:[%s1788 + $0x18] sm:$0xf] %vm1303, %v1753
        %1796 = vst.msk [vmem:[%s1788 + $0x1c] sm:$0xf] %vm1303, %v1755
        %1797 = vst.msk [vmem:[%s1788 + $0x20] sm:$0xf] %vm1303, %v1757
        %1798 = vst.msk [vmem:[%s1788 + $0x24] sm:$0xf] %vm1303, %v1759
        %1799 = vst.msk [vmem:[%s1788 + $0x28] sm:$0xf] %vm1303, %v1761
        %1800 = vst.msk [vmem:[%s1788 + $0x2c] sm:$0xf] %vm1303, %v1763
        %1801 = vst.msk [vmem:[%s1788 + $0x30] sm:$0xf] %vm1303, %v1765
        %1802 = vst.msk [vmem:[%s1788 + $0x34] sm:$0xf] %vm1303, %v1767
        %1803 = vst.msk [vmem:[%s1788 + $0x38] sm:$0xf] %vm1303, %v1769
        %1804 = vst.msk [vmem:[%s1788 + $0x3c] sm:$0xf] %vm1303, %v1771
        %1805 = vrot.lane.b32.xlu0 %v1432, 64
        %v1806 = vpop.permute.xlu0 %1805
        %1807 = vrot.lane.b32.xlu0 %v1433, 64
        %v1808 = vpop.permute.xlu0 %1807
        %1809 = vrot.lane.b32.xlu0 %v1434, 64
        %v1810 = vpop.permute.xlu0 %1809
        %1811 = vrot.lane.b32.xlu0 %v1435, 64
        %v1812 = vpop.permute.xlu0 %1811
        %1813 = vrot.lane.b32.xlu0 %v1436, 64
        %v1814 = vpop.permute.xlu0 %1813
        %1815 = vrot.lane.b32.xlu0 %v1437, 64
        %v1816 = vpop.permute.xlu0 %1815
        %1817 = vrot.lane.b32.xlu0 %v1438, 64
        %v1818 = vpop.permute.xlu0 %1817
        %1819 = vrot.lane.b32.xlu0 %v1439, 64
        %v1820 = vpop.permute.xlu0 %1819
        %1821 = vrot.lane.b32.xlu0 %v1440, 64
        %v1822 = vpop.permute.xlu0 %1821
        %1823 = vrot.lane.b32.xlu0 %v1441, 64
        %v1824 = vpop.permute.xlu0 %1823
        %1825 = vrot.lane.b32.xlu0 %v1442, 64
        %v1826 = vpop.permute.xlu0 %1825
        %1827 = vrot.lane.b32.xlu0 %v1443, 64
        %v1828 = vpop.permute.xlu0 %1827
        %1829 = vrot.lane.b32.xlu0 %v1444, 64
        %v1830 = vpop.permute.xlu0 %1829
        %1831 = vrot.lane.b32.xlu0 %v1445, 64
        %v1832 = vpop.permute.xlu0 %1831
        %1833 = vrot.lane.b32.xlu0 %v1446, 64
        %v1834 = vpop.permute.xlu0 %1833
        %1835 = vrot.lane.b32.xlu0 %v1447, 64
        %v1836 = vpop.permute.xlu0 %1835
        %s1853 = scalar_lea.vmem %s382, 128 [#allocation11]
        %1854 = vst.msk [vmem:[%s1853] sm:$0xf] %vm1303, %v1806
        %1855 = vst.msk [vmem:[%s1853 + $0x4] sm:$0xf] %vm1303, %v1808
        %1856 = vst.msk [vmem:[%s1853 + $0x8] sm:$0xf] %vm1303, %v1810
        %1857 = vst.msk [vmem:[%s1853 + $0xc] sm:$0xf] %vm1303, %v1812
        %1858 = vst.msk [vmem:[%s1853 + $0x10] sm:$0xf] %vm1303, %v1814
        %1859 = vst.msk [vmem:[%s1853 + $0x14] sm:$0xf] %vm1303, %v1816
        %1860 = vst.msk [vmem:[%s1853 + $0x18] sm:$0xf] %vm1303, %v1818
        %1861 = vst.msk [vmem:[%s1853 + $0x1c] sm:$0xf] %vm1303, %v1820
        %1862 = vst.msk [vmem:[%s1853 + $0x20] sm:$0xf] %vm1303, %v1822
        %1863 = vst.msk [vmem:[%s1853 + $0x24] sm:$0xf] %vm1303, %v1824
        %1864 = vst.msk [vmem:[%s1853 + $0x28] sm:$0xf] %vm1303, %v1826
        %1865 = vst.msk [vmem:[%s1853 + $0x2c] sm:$0xf] %vm1303, %v1828
        %1866 = vst.msk [vmem:[%s1853 + $0x30] sm:$0xf] %vm1303, %v1830
        %1867 = vst.msk [vmem:[%s1853 + $0x34] sm:$0xf] %vm1303, %v1832
        %1868 = vst.msk [vmem:[%s1853 + $0x38] sm:$0xf] %vm1303, %v1834
        %1869 = vst.msk [vmem:[%s1853 + $0x3c] sm:$0xf] %vm1303, %v1836
        %1870 = vrot.lane.b32.xlu0 %v1271, 32
        %v1871 = vpop.permute.xlu0 %1870
        %1872 = vrot.lane.b32.xlu0 %v1272, 32
        %v1873 = vpop.permute.xlu0 %1872
        %1874 = vrot.lane.b32.xlu0 %v1273, 32
        %v1875 = vpop.permute.xlu0 %1874
        %1876 = vrot.lane.b32.xlu0 %v1274, 32
        %v1877 = vpop.permute.xlu0 %1876
        %1878 = vrot.lane.b32.xlu0 %v1275, 32
        %v1879 = vpop.permute.xlu0 %1878
        %1880 = vrot.lane.b32.xlu0 %v1276, 32
        %v1881 = vpop.permute.xlu0 %1880
        %1882 = vrot.lane.b32.xlu0 %v1277, 32
        %v1883 = vpop.permute.xlu0 %1882
        %1884 = vrot.lane.b32.xlu0 %v1278, 32
        %v1885 = vpop.permute.xlu0 %1884
        %1886 = vrot.lane.b32.xlu0 %v1279, 32
        %v1887 = vpop.permute.xlu0 %1886
        %1888 = vrot.lane.b32.xlu0 %v1280, 32
        %v1889 = vpop.permute.xlu0 %1888
        %1890 = vrot.lane.b32.xlu0 %v1281, 32
        %v1891 = vpop.permute.xlu0 %1890
        %1892 = vrot.lane.b32.xlu0 %v1282, 32
        %v1893 = vpop.permute.xlu0 %1892
        %1894 = vrot.lane.b32.xlu0 %v1283, 32
        %v1895 = vpop.permute.xlu0 %1894
        %1896 = vrot.lane.b32.xlu0 %v1284, 32
        %v1897 = vpop.permute.xlu0 %1896
        %1898 = vrot.lane.b32.xlu0 %v1285, 32
        %v1899 = vpop.permute.xlu0 %1898
        %1900 = vrot.lane.b32.xlu0 %v1286, 32
        %v1901 = vpop.permute.xlu0 %1900
        %s1918 = scalar_lea.vmem %s368, 192 [#allocation8]
        %1919 = vst.msk [vmem:[%s1918] sm:$0xf] %vm1303, %v1871
        %1920 = vst.msk [vmem:[%s1918 + $0x4] sm:$0xf] %vm1303, %v1873
        %1921 = vst.msk [vmem:[%s1918 + $0x8] sm:$0xf] %vm1303, %v1875
        %1922 = vst.msk [vmem:[%s1918 + $0xc] sm:$0xf] %vm1303, %v1877
        %1923 = vst.msk [vmem:[%s1918 + $0x10] sm:$0xf] %vm1303, %v1879
        %1924 = vst.msk [vmem:[%s1918 + $0x14] sm:$0xf] %vm1303, %v1881
        %1925 = vst.msk [vmem:[%s1918 + $0x18] sm:$0xf] %vm1303, %v1883
        %1926 = vst.msk [vmem:[%s1918 + $0x1c] sm:$0xf] %vm1303, %v1885
        %1927 = vst.msk [vmem:[%s1918 + $0x20] sm:$0xf] %vm1303, %v1887
        %1928 = vst.msk [vmem:[%s1918 + $0x24] sm:$0xf] %vm1303, %v1889
        %1929 = vst.msk [vmem:[%s1918 + $0x28] sm:$0xf] %vm1303, %v1891
        %1930 = vst.msk [vmem:[%s1918 + $0x2c] sm:$0xf] %vm1303, %v1893
        %1931 = vst.msk [vmem:[%s1918 + $0x30] sm:$0xf] %vm1303, %v1895
        %1932 = vst.msk [vmem:[%s1918 + $0x34] sm:$0xf] %vm1303, %v1897
        %1933 = vst.msk [vmem:[%s1918 + $0x38] sm:$0xf] %vm1303, %v1899
        %1934 = vst.msk [vmem:[%s1918 + $0x3c] sm:$0xf] %vm1303, %v1901
        %1935 = vrot.lane.b32.xlu0 %v1352, 32
        %v1936 = vpop.permute.xlu0 %1935
        %1937 = vrot.lane.b32.xlu0 %v1353, 32
        %v1938 = vpop.permute.xlu0 %1937
        %1939 = vrot.lane.b32.xlu0 %v1354, 32
        %v1940 = vpop.permute.xlu0 %1939
        %1941 = vrot.lane.b32.xlu0 %v1355, 32
        %v1942 = vpop.permute.xlu0 %1941
        %1943 = vrot.lane.b32.xlu0 %v1356, 32
        %v1944 = vpop.permute.xlu0 %1943
        %1945 = vrot.lane.b32.xlu0 %v1357, 32
        %v1946 = vpop.permute.xlu0 %1945
        %1947 = vrot.lane.b32.xlu0 %v1358, 32
        %v1948 = vpop.permute.xlu0 %1947
        %1949 = vrot.lane.b32.xlu0 %v1359, 32
        %v1950 = vpop.permute.xlu0 %1949
        %1951 = vrot.lane.b32.xlu0 %v1360, 32
        %v1952 = vpop.permute.xlu0 %1951
        %1953 = vrot.lane.b32.xlu0 %v1361, 32
        %v1954 = vpop.permute.xlu0 %1953
        %1955 = vrot.lane.b32.xlu0 %v1362, 32
        %v1956 = vpop.permute.xlu0 %1955
        %1957 = vrot.lane.b32.xlu0 %v1363, 32
        %v1958 = vpop.permute.xlu0 %1957
        %1959 = vrot.lane.b32.xlu0 %v1364, 32
        %v1960 = vpop.permute.xlu0 %1959
        %1961 = vrot.lane.b32.xlu0 %v1365, 32
        %v1962 = vpop.permute.xlu0 %1961
        %1963 = vrot.lane.b32.xlu0 %v1366, 32
        %v1964 = vpop.permute.xlu0 %1963
        %1965 = vrot.lane.b32.xlu0 %v1367, 32
        %v1966 = vpop.permute.xlu0 %1965
        %s1983 = scalar_lea.vmem %s375, 192 [#allocation9]
        %1984 = vst.msk [vmem:[%s1983] sm:$0xf] %vm1303, %v1936
        %1985 = vst.msk [vmem:[%s1983 + $0x4] sm:$0xf] %vm1303, %v1938
        %1986 = vst.msk [vmem:[%s1983 + $0x8] sm:$0xf] %vm1303, %v1940
        %1987 = vst.msk [vmem:[%s1983 + $0xc] sm:$0xf] %vm1303, %v1942
        %1988 = vst.msk [vmem:[%s1983 + $0x10] sm:$0xf] %vm1303, %v1944
        %1989 = vst.msk [vmem:[%s1983 + $0x14] sm:$0xf] %vm1303, %v1946
        %1990 = vst.msk [vmem:[%s1983 + $0x18] sm:$0xf] %vm1303, %v1948
        %1991 = vst.msk [vmem:[%s1983 + $0x1c] sm:$0xf] %vm1303, %v1950
        %1992 = vst.msk [vmem:[%s1983 + $0x20] sm:$0xf] %vm1303, %v1952
        %1993 = vst.msk [vmem:[%s1983 + $0x24] sm:$0xf] %vm1303, %v1954
        %1994 = vst.msk [vmem:[%s1983 + $0x28] sm:$0xf] %vm1303, %v1956
        %1995 = vst.msk [vmem:[%s1983 + $0x2c] sm:$0xf] %vm1303, %v1958
        %1996 = vst.msk [vmem:[%s1983 + $0x30] sm:$0xf] %vm1303, %v1960
        %1997 = vst.msk [vmem:[%s1983 + $0x34] sm:$0xf] %vm1303, %v1962
        %1998 = vst.msk [vmem:[%s1983 + $0x38] sm:$0xf] %vm1303, %v1964
        %1999 = vst.msk [vmem:[%s1983 + $0x3c] sm:$0xf] %vm1303, %v1966
        %2000 = vrot.lane.b32.xlu0 %v1432, 32
        %v2001 = vpop.permute.xlu0 %2000
        %2002 = vrot.lane.b32.xlu0 %v1433, 32
        %v2003 = vpop.permute.xlu0 %2002
        %2004 = vrot.lane.b32.xlu0 %v1434, 32
        %v2005 = vpop.permute.xlu0 %2004
        %2006 = vrot.lane.b32.xlu0 %v1435, 32
        %v2007 = vpop.permute.xlu0 %2006
        %2008 = vrot.lane.b32.xlu0 %v1436, 32
        %v2009 = vpop.permute.xlu0 %2008
        %2010 = vrot.lane.b32.xlu0 %v1437, 32
        %v2011 = vpop.permute.xlu0 %2010
        %2012 = vrot.lane.b32.xlu0 %v1438, 32
        %v2013 = vpop.permute.xlu0 %2012
        %2014 = vrot.lane.b32.xlu0 %v1439, 32
        %v2015 = vpop.permute.xlu0 %2014
        %2016 = vrot.lane.b32.xlu0 %v1440, 32
        %v2017 = vpop.permute.xlu0 %2016
        %2018 = vrot.lane.b32.xlu0 %v1441, 32
        %v2019 = vpop.permute.xlu0 %2018
        %2020 = vrot.lane.b32.xlu0 %v1442, 32
        %v2021 = vpop.permute.xlu0 %2020
        %2022 = vrot.lane.b32.xlu0 %v1443, 32
        %v2023 = vpop.permute.xlu0 %2022
        %2024 = vrot.lane.b32.xlu0 %v1444, 32
        %v2025 = vpop.permute.xlu0 %2024
        %2026 = vrot.lane.b32.xlu0 %v1445, 32
        %v2027 = vpop.permute.xlu0 %2026
        %2028 = vrot.lane.b32.xlu0 %v1446, 32
        %v2029 = vpop.permute.xlu0 %2028
        %2030 = vrot.lane.b32.xlu0 %v1447, 32
        %v2031 = vpop.permute.xlu0 %2030
        %s2048 = scalar_lea.vmem %s382, 192 [#allocation11]
        %2049 = vst.msk [vmem:[%s2048] sm:$0xf] %vm1303, %v2001
        %2050 = vst.msk [vmem:[%s2048 + $0x4] sm:$0xf] %vm1303, %v2003
        %2051 = vst.msk [vmem:[%s2048 + $0x8] sm:$0xf] %vm1303, %v2005
        %2052 = vst.msk [vmem:[%s2048 + $0xc] sm:$0xf] %vm1303, %v2007
        %2053 = vst.msk [vmem:[%s2048 + $0x10] sm:$0xf] %vm1303, %v2009
        %2054 = vst.msk [vmem:[%s2048 + $0x14] sm:$0xf] %vm1303, %v2011
        %2055 = vst.msk [vmem:[%s2048 + $0x18] sm:$0xf] %vm1303, %v2013
        %2056 = vst.msk [vmem:[%s2048 + $0x1c] sm:$0xf] %vm1303, %v2015
        %2057 = vst.msk [vmem:[%s2048 + $0x20] sm:$0xf] %vm1303, %v2017
        %2058 = vst.msk [vmem:[%s2048 + $0x24] sm:$0xf] %vm1303, %v2019
        %2059 = vst.msk [vmem:[%s2048 + $0x28] sm:$0xf] %vm1303, %v2021
        %2060 = vst.msk [vmem:[%s2048 + $0x2c] sm:$0xf] %vm1303, %v2023
        %2061 = vst.msk [vmem:[%s2048 + $0x30] sm:$0xf] %vm1303, %v2025
        %2062 = vst.msk [vmem:[%s2048 + $0x34] sm:$0xf] %vm1303, %v2027
        %2063 = vst.msk [vmem:[%s2048 + $0x38] sm:$0xf] %vm1303, %v2029
        %2064 = vst.msk [vmem:[%s2048 + $0x3c] sm:$0xf] %vm1303, %v2031
        %s2065 = sand.u32 %s133, 1
        %s2066 = scalar_lea.sflag [#allocation4], %s2065
        %s2067 = sand.u32 %s133, 1
        %s2068 = smul.addr %s2067, 256
        %s2069 = scalar_lea.vmem [#allocation8], %s2068
        %s2070 = sand.u32 %s33, 1
        %s2071 = scalar_lea.sflag [#allocation10], %s2070
        %s2072 = sand.u32 %s161, 1
        %s2073 = smul.addr %s2072, 256
        %s2074 = scalar_lea.vmem [#allocation9], %s2073
        %s2075 = sand.u32 %s33, 1
        %s2076 = scalar_lea.sflag [#allocation10], %s2075
        %s2077 = sand.u32 %s189, 1
        %s2078 = smul.addr %s2077, 256
        %s2079 = scalar_lea.vmem [#allocation11], %s2078
        %s2080 = sand.u32 %s217, 1
        %s2081 = scalar_lea.sflag [#allocation13], %s2080
        %s2082 = sand.u32 %s217, 1
        %s2083 = smul.addr %s2082, 128
        %s2084 = scalar_lea.vmem [#allocation12], %s2083
        // Predicated region
        $region45: #{tpu_custom_call.1} parent=31 // pred_check
          %p2085 = pneg %p143
        $region46: #{tpu_custom_call.1} parent=31 // pred_check_branch
          %2087 = sbr.rel (%p2085) target = $region48
        $region47: #{tpu_custom_call.1} parent=31 // pred_region
          #allocation15 [shape = 'u32[6]{0}', space=smem, size = 0x18, scoped, tag = 'DMA stride descriptor']
          %s2088 = smul.u32 4, %s37
          %s2089 = smul.u32 16, %s38
          %s2091 = ssub.s32 4096, 4096
          %2092 = vsyncadd %s2066, %s2091
          %s2093 = smul.addr %s2088, 32
          %s2094 = sadd.s32 %s2089, %s2093
          %s2095 = smul.addr %s2094, 64
          %s2096 = scalar_lea.hbm %s3, %s2095
          %s2098 = sshll.u32 1, 14
          %s2099 = sxor.u32 4294967295, %s2098
          %s2102 = sshll.u32 7, 18
          %s2103 = sxor.u32 4294967295, %s2102
          %s2104 = sand.u32 0, %s2103
          %s2106 = sor.u32 %s2104, 0
          %s2108 = sshll.u32 3, 24
          %s2109 = sxor.u32 4294967295, %s2108
          %s2110 = sand.u32 %s2106, %s2109
          %s2112 = sor.u32 %s2110, 0
          %s2113 = sshll.u32 %s2069, 4
          %s2114 = int_to_ptr.vmem [resolvable:$true] %s2113
          %2120 = sst [smem:[#allocation15]] 1024
          %s2121 = scalar_lea.smem [#allocation15], 1
          %2122 = sst [smem:[%s2121]] 2048
          %s2123 = scalar_lea.smem [#allocation15], 2
          %2124 = sst [smem:[%s2123]] 16
          %s2125 = scalar_lea.smem [#allocation15], 3
          %2126 = sst [smem:[%s2125]] 64
          %s2127 = scalar_lea.smem [#allocation15], 4
          %2128 = sst [smem:[%s2127]] 64
          %s2129 = scalar_lea.smem [#allocation15], 5
          %2130 = sst [smem:[%s2129]] 4
          %2132 = dma.general %s2114, 4096, %s2096, %s2066, [#allocation14], [#allocation15], %s2112, 0
        $region48: #{tpu_custom_call.1} parent=31 // pred_fallthru
          _
        // Predicated region
        $region49: #{tpu_custom_call.1} parent=31 // pred_check
          %p2133 = pneg %p171
        $region50: #{tpu_custom_call.1} parent=31 // pred_check_branch
          %2135 = sbr.rel (%p2133) target = $region52
        $region51: #{tpu_custom_call.1} parent=31 // pred_region
          #allocation17 [shape = 'u32[6]{0}', space=smem, size = 0x18, scoped, tag = 'DMA stride descriptor']
          %s2136 = smul.u32 4, %s37
          %s2137 = smul.u32 16, %s38
          %s2139 = ssub.s32 4096, 4096
          %2140 = vsyncadd %s2071, %s2139
          %s2141 = smul.addr %s2136, 32
          %s2142 = sadd.s32 %s2137, %s2141
          %s2143 = smul.addr %s2142, 64
          %s2144 = scalar_lea.hbm %s4, %s2143
          %s2146 = sshll.u32 1, 14
          %s2147 = sxor.u32 4294967295, %s2146
          %s2150 = sshll.u32 7, 18
          %s2151 = sxor.u32 4294967295, %s2150
          %s2152 = sand.u32 0, %s2151
          %s2154 = sor.u32 %s2152, 0
          %s2156 = sshll.u32 3, 24
          %s2157 = sxor.u32 4294967295, %s2156
          %s2158 = sand.u32 %s2154, %s2157
          %s2160 = sor.u32 %s2158, 0
          %s2161 = sshll.u32 %s2074, 4
          %s2162 = int_to_ptr.vmem [resolvable:$true] %s2161
          %2168 = sst [smem:[#allocation17]] 1024
          %s2169 = scalar_lea.smem [#allocation17], 1
          %2170 = sst [smem:[%s2169]] 2048
          %s2171 = scalar_lea.smem [#allocation17], 2
          %2172 = sst [smem:[%s2171]] 16
          %s2173 = scalar_lea.smem [#allocation17], 3
          %2174 = sst [smem:[%s2173]] 64
          %s2175 = scalar_lea.smem [#allocation17], 4
          %2176 = sst [smem:[%s2175]] 64
          %s2177 = scalar_lea.smem [#allocation17], 5
          %2178 = sst [smem:[%s2177]] 4
          %2180 = dma.general %s2162, 4096, %s2144, %s2071, [#allocation16], [#allocation17], %s2160, 0
        $region52: #{tpu_custom_call.1} parent=31 // pred_fallthru
          _
        // Predicated region
        $region53: #{tpu_custom_call.1} parent=31 // pred_check
          %p2181 = pneg %p199
        $region54: #{tpu_custom_call.1} parent=31 // pred_check_branch
          %2183 = sbr.rel (%p2181) target = $region56
        $region55: #{tpu_custom_call.1} parent=31 // pred_region
          #allocation19 [shape = 'u32[6]{0}', space=smem, size = 0x18, scoped, tag = 'DMA stride descriptor']
          %s2184 = smul.u32 4, %s37
          %s2185 = smul.u32 16, %s38
          %s2187 = ssub.s32 4096, 4096
          %2188 = vsyncadd %s2076, %s2187
          %s2189 = smul.addr %s2184, 32
          %s2190 = sadd.s32 %s2185, %s2189
          %s2191 = smul.addr %s2190, 64
          %s2192 = scalar_lea.hbm %s5, %s2191
          %s2194 = sshll.u32 1, 14
          %s2195 = sxor.u32 4294967295, %s2194
          %s2198 = sshll.u32 7, 18
          %s2199 = sxor.u32 4294967295, %s2198
          %s2200 = sand.u32 0, %s2199
          %s2202 = sor.u32 %s2200, 0
          %s2204 = sshll.u32 3, 24
          %s2205 = sxor.u32 4294967295, %s2204
          %s2206 = sand.u32 %s2202, %s2205
          %s2208 = sor.u32 %s2206, 0
          %s2209 = sshll.u32 %s2079, 4
          %s2210 = int_to_ptr.vmem [resolvable:$true] %s2209
          %2216 = sst [smem:[#allocation19]] 1024
          %s2217 = scalar_lea.smem [#allocation19], 1
          %2218 = sst [smem:[%s2217]] 2048
          %s2219 = scalar_lea.smem [#allocation19], 2
          %2220 = sst [smem:[%s2219]] 16
          %s2221 = scalar_lea.smem [#allocation19], 3
          %2222 = sst [smem:[%s2221]] 64
          %s2223 = scalar_lea.smem [#allocation19], 4
          %2224 = sst [smem:[%s2223]] 64
          %s2225 = scalar_lea.smem [#allocation19], 5
          %2226 = sst [smem:[%s2225]] 4
          %2228 = dma.general %s2210, 4096, %s2192, %s2076, [#allocation18], [#allocation19], %s2208, 0
        $region56: #{tpu_custom_call.1} parent=31 // pred_fallthru
          _
        // Predicated region
        $region57: #{tpu_custom_call.1} parent=31 // pred_check
          %p2229 = pneg %p227
        $region58: #{tpu_custom_call.1} parent=31 // pred_check_branch
          %2231 = sbr.rel (%p2229) target = $region60
        $region59: #{tpu_custom_call.1} parent=31 // pred_region
          %s2232 = smul.u32 16, %s38
          %s2234 = ssub.s32 2048, 2048
          %2235 = vsyncadd %s2081, %s2234
          %s2236 = smul.addr %s2232, 2
          %s2237 = sadd.s32 %s37, %s2236
          %s2238 = smul.addr %s2237, 128
          %s2239 = scalar_lea.hbm %s6, %s2238
          %s2240 = sshll.u32 %s2084, 4
          %s2241 = int_to_ptr.vmem [resolvable:$true] %s2240
          %2246 = dma.vmem_to_hbm [thread:$0]  %s2241, 2048, %s2239, %s2081, 128, 256, 8
        $region60: #{tpu_custom_call.1} parent=31 // pred_fallthru
          _
      $region32: #{tpu_custom_call.1} parent=5 // pred_fallthru
        _
      %p2247 = scmp.le.s32.totalorder 2, %s28
      // Predicated region
      $region61: #{tpu_custom_call.1} parent=5 // pred_check
        %p2248 = pneg %p2247
      $region62: #{tpu_custom_call.1} parent=5 // pred_check_branch
        %2250 = sbr.rel (%p2248) target = $region64
      $region63: #{tpu_custom_call.1} parent=5 // pred_region
        %s2251 = ssub.s32 %s28, 2
        // Predicated region
        $region65: #{tpu_custom_call.1} parent=63 // pred_check
          %p2252 = pneg %p149
        $region66: #{tpu_custom_call.1} parent=63 // pred_check_branch
          %2254 = sbr.rel (%p2252) target = $region68
        $region67: #{tpu_custom_call.1} parent=63 // pred_region
          %s2255 = sand.u32 %s134, 1
          %s2256 = scalar_lea.sflag [#allocation4], %s2255
          %s2257 = sand.u32 %s134, 1
          %s2258 = smul.addr %s2257, 256
          %s2259 = scalar_lea.vmem [#allocation8], %s2258
          %2260 = dma.done %s2256, 4096
        $region68: #{tpu_custom_call.1} parent=63 // pred_fallthru
          _
        // Predicated region
        $region69: #{tpu_custom_call.1} parent=63 // pred_check
          %p2261 = pneg %p177
        $region70: #{tpu_custom_call.1} parent=63 // pred_check_branch
          %2263 = sbr.rel (%p2261) target = $region72
        $region71: #{tpu_custom_call.1} parent=63 // pred_region
          %s2264 = sand.u32 %s34, 1
          %s2265 = scalar_lea.sflag [#allocation10], %s2264
          %s2266 = sand.u32 %s162, 1
          %s2267 = smul.addr %s2266, 256
          %s2268 = scalar_lea.vmem [#allocation9], %s2267
          %2269 = dma.done %s2265, 4096
        $region72: #{tpu_custom_call.1} parent=63 // pred_fallthru
          _
        // Predicated region
        $region73: #{tpu_custom_call.1} parent=63 // pred_check
          %p2270 = pneg %p205
        $region74: #{tpu_custom_call.1} parent=63 // pred_check_branch
          %2272 = sbr.rel (%p2270) target = $region76
        $region75: #{tpu_custom_call.1} parent=63 // pred_region
          %s2273 = sand.u32 %s34, 1
          %s2274 = scalar_lea.sflag [#allocation10], %s2273
          %s2275 = sand.u32 %s190, 1
          %s2276 = smul.addr %s2275, 256
          %s2277 = scalar_lea.vmem [#allocation11], %s2276
          %2278 = dma.done %s2274, 4096
        $region76: #{tpu_custom_call.1} parent=63 // pred_fallthru
          _
        // Predicated region
        $region77: #{tpu_custom_call.1} parent=63 // pred_check
          %p2279 = pneg %p233
        $region78: #{tpu_custom_call.1} parent=63 // pred_check_branch
          %2281 = sbr.rel (%p2279) target = $region80
        $region79: #{tpu_custom_call.1} parent=63 // pred_region
          %s2282 = sand.u32 %s218, 1
          %s2283 = scalar_lea.sflag [#allocation13], %s2282
          %s2284 = sand.u32 %s218, 1
          %s2285 = smul.addr %s2284, 128
          %s2286 = scalar_lea.vmem [#allocation12], %s2285
          %2287 = dma.done %s2283, 2048
        $region80: #{tpu_custom_call.1} parent=63 // pred_fallthru
          _
      $region64: #{tpu_custom_call.1} parent=5 // pred_fallthru
        _
    $region6: #{tpu_custom_call.1} parent=1 // loop_footer
      %s32 = sadd.s32 1, %s28
    $region7: #{tpu_custom_call.1} parent=1 // loop_footer_branch
      %27 = sbr.rel target = $region3
    $region8: #{tpu_custom_call.1} parent=1 // loop_exit
      _
    %2288 = vsyncpa [#allocation3], 1
    %s2289 = scalar_lea.sflag [#allocation3], 1
    %2290 = vsyncpa %s2289, 1
    %2291 = vsyncpa [#allocation6], 1
    %s2292 = scalar_lea.sflag [#allocation6], 1
    %2293 = vsyncpa %s2292, 1
    %2294 = vsyncpa [#allocation4], 1
    %s2295 = scalar_lea.sflag [#allocation4], 1
    %2296 = vsyncpa %s2295, 1
    %2297 = vsyncpa [#allocation10], 1
    %s2298 = scalar_lea.sflag [#allocation10], 1
    %2299 = vsyncpa %s2298, 1
    %2300 = vsyncpa [#allocation13], 1
    %s2301 = scalar_lea.sflag [#allocation13], 1
    %2302 = vsyncpa %s2301, 1

</llo_original>
